<compile_context>
chip_gen: v7x
topology: tpu7x:2x2x1
jax: 0.10.0
libtpu: 0.0.40
codegen_flags: <defaults>
</compile_context>

<pallas_src>
import functools

import jax
import jax.numpy as jnp
from jax.experimental import pallas as pl
from jax.experimental.pallas import tpu as pltpu


# ----------------------------------------------------------------------------
# small helpers
# ----------------------------------------------------------------------------
def _round_up(x, m):
    return (x + m - 1) // m * m


def _pad_feat(d, need_spare):
    """Pad a feature dim to a multiple of 128 lanes; guarantee >=1 spare
    (zero) column when `need_spare` (used to carry the mean-pool count)."""
    p = _round_up(d, 128)
    if need_spare and p == d:
        p += 128
    return p


def _act(y, leaky):
    if leaky:
        return jnp.where(y >= 0.0, y, 0.01 * y)   # nn.LeakyReLU() default slope
    return jnp.maximum(y, 0.0)                     # F.relu


def _dot_act(x, w, b, *, leaky, cdt):
    y = jnp.dot(x.astype(cdt), w.astype(cdt), preferred_element_type=jnp.float32)
    return _act(y + b, leaky)


def _choose_tiling(n, tile_rows):
    # row tile must be a multiple of 128 (cluster-id row block is (1, TM))
    tm = max(128, min(_round_up(tile_rows, 128), _round_up(max(n, 1), 128)))
    n_pad = _round_up(max(n, 1), tm)
    return tm, n_pad


def _pad_rows(x, n_pad):
    return jnp.pad(x, ((0, n_pad - x.shape[0]), (0, 0)))


def _pad_linear(w, b, din_real, din_pad, dout_pad):
    dout_real = w.shape[1]
    wp = jnp.zeros((din_pad, dout_pad), jnp.float32).at[:din_real, :dout_real].set(w)
    bp = jnp.zeros((1, dout_pad), jnp.float32).at[:, :dout_real].set(b)
    return wp, bp


def _pad_chain(layers, din_real, din_pad, *, spare_last):
    """Pad a chain of (w, b) layers so consecutive padded dims match.
    Zero-padded columns + zero bias -> padded activations are exactly 0 after
    (leaky)ReLU, so results are unchanged."""
    padded = []
    for idx, (w, b) in enumerate(layers):
        dout_real = w.shape[1]
        dout_pad = _pad_feat(dout_real, spare_last and idx == len(layers) - 1)
        padded.append(_pad_linear(w, b, din_real, din_pad, dout_pad))
        din_real, din_pad = dout_real, dout_pad
    return padded, din_real, din_pad


def _vmem_limit(*, tile_bytes, const_bytes, scratch_bytes, out_bytes):
    """Generation-aware VMEM budget: derived from actual working-set sizes
    (double-buffered row tiles / constants / outputs + resident scratch),
    with headroom, capped well under physical VMEM on all generations."""
    total = (2 * sum(tile_bytes) + 2 * sum(const_bytes)
             + scratch_bytes + 2 * sum(out_bytes))
    total = int(total * 1.25) + (4 << 20)
    return max(16 << 20, min(total, 100 << 20))


def _segment_pool_step(acc_ref, h, oh_ct, *, mean, cdt, live):
    """Accumulate one point tile into the resident (C_pad, D_pad) accumulator.

    mean: one-hot matmul on the MXU; the last (zero) padded column of h is
          hijacked as an all-ones column so the same matmul also produces the
          per-cluster counts.
    max : lane-dense chunked masked max (h transposed so TM is the lane axis,
          sliced to the live feature sublanes, 8 clusters per chunk)."""
    c_pad, d_pad = acc_ref.shape
    tm = h.shape[0]
    if mean:
        is_cnt_col = (jax.lax.broadcasted_iota(jnp.int32, (tm, d_pad), 1)
                      == (d_pad - 1))
        h_pool = jnp.where(is_cnt_col, 1.0, h)          # count column rides along
        acc_ref[...] += jnp.dot(oh_ct.astype(cdt), h_pool.astype(cdt),
                                preferred_element_type=jnp.float32)
    else:
        h_t = h.T[:live, :]                             # (live, TM): TM lane-dense
        neg = jnp.float32(-jnp.inf)
        # static chunk loop over clusters, 8 per chunk (bounded intermediates)
        for c0 in range(0, c_pad, 8):
            mask = oh_ct[c0:c0 + 8, :]                  # (8, TM) bool
            blk = jnp.max(jnp.where(mask[:, None, :], h_t[None, :, :], neg),
                          axis=2)                       # (8, live)
            acc_ref[c0:c0 + 8, :live] = jnp.maximum(acc_ref[c0:c0 + 8, :live], blk)


def _finalize_pool(acc_val, *, mean):
    if mean:
        d_pad = acc_val.shape[1]
        cnt = acc_val[:, d_pad - 1:d_pad]
        return acc_val / jnp.maximum(cnt, 1.0)
    # max path: f32 accumulator with -inf sentinel; guard empty clusters -> 0
    return jnp.where(acc_val > -jnp.inf, acc_val, 0.0)


# ----------------------------------------------------------------------------
# Kernel 1: fused neighborhood encoder
#   point MLP over a row tile -> segment pool into (C_pad, E_pool) scratch
#   -> (last step) global MLP -> nb_enc output  +  enc_proj = nb_enc @ W_enc
# ----------------------------------------------------------------------------
def _nb_enc_kernel(*refs, n_pt, n_gl, mean, leaky, cdt, e_live):
    i = 0
    rel_ref = refs[i]; i += 1
    clr_ref = refs[i]; i += 1          # (1, TM) int32 cluster ids (row layout)
    pt_wb = [(refs[i + 2 * k], refs[i + 2 * k + 1]) for k in range(n_pt)]
    i += 2 * n_pt
    gl_wb = [(refs[i + 2 * k], refs[i + 2 * k + 1]) for k in range(n_gl)]
    i += 2 * n_gl
    wenc_ref = refs[i]; i += 1         # (E_g_pad, h0_pad) first-fc enc segment
    nb_ref = refs[i]; i += 1           # (C_pad, E_g_pad) output
    proj_ref = refs[i]; i += 1         # (C_pad, h0_pad) output (hoisted enc_w)
    acc_ref = refs[i]; i += 1          # (C_pad, E_pool_pad) running max / sum

    t = pl.program_id(0)
    c_pad = acc_ref.shape[0]
    tm = rel_ref.shape[0]

    @pl.when(t == 0)
    def _init():
        acc_ref[...] = (jnp.zeros_like(acc_ref) if mean
                        else jnp.full_like(acc_ref, -jnp.inf))

    # per-point MLP on the resident tile
    h = rel_ref[...]
    for w_ref, b_ref in pt_wb:
        h = _dot_act(h, w_ref[...], b_ref[...], leaky=leaky, cdt=cdt)

    # one-hot mask (C_pad, TM); padded rows carry an out-of-range id -> all-zero
    cl_r = clr_ref[...]
    oh_ct = jax.lax.broadcasted_iota(jnp.int32, (c_pad, tm), 0) == cl_r

    _segment_pool_step(acc_ref, h, oh_ct, mean=mean, cdt=cdt, live=e_live)

    @pl.when(t == pl.num_programs(0) - 1)
    def _finalize():
        g = _finalize_pool(acc_ref[...], mean=mean)
        for w_ref, b_ref in gl_wb:
            g = _dot_act(g, w_ref[...], b_ref[...], leaky=leaky, cdt=cdt)
        nb_ref[...] = g.astype(nb_ref.dtype)
        # hoisted gather source for kernel 2: nb_enc @ W_enc, computed once
        proj_ref[...] = jnp.dot(g.astype(cdt), wenc_ref[...].astype(cdt),
                                preferred_element_type=jnp.float32
                                ).astype(proj_ref.dtype)


def _nb_enc_call(rel_p, cl_row, pt_pad, gl_pad, w_enc, c_pad, *,
                 mean, leaky, cdt, tm, e_live):
    n_pad = rel_p.shape[0]
    grid = (n_pad // tm,)
    e_pool_pad = pt_pad[-1][0].shape[1]
    e_g_pad = gl_pad[-1][0].shape[1] if gl_pad else e_pool_pad
    h0_pad = w_enc.shape[1]

    in_specs = [
        pl.BlockSpec((tm, rel_p.shape[1]), lambda t: (t, 0)),
        pl.BlockSpec((1, tm), lambda t: (0, t)),
    ]
    args = [rel_p, cl_row]
    const_args = []
    for w, b in list(pt_pad) + list(gl_pad):
        const_args.extend([w, b])
    const_args.append(w_enc)
    for a in const_args:
        in_specs.append(pl.BlockSpec(a.shape, lambda t: (0, 0)))
    args.extend(const_args)

    out_shape = (jax.ShapeDtypeStruct((c_pad, e_g_pad), jnp.float32),
                 jax.ShapeDtypeStruct((c_pad, h0_pad), jnp.float32))
    out_specs = [pl.BlockSpec((c_pad, e_g_pad), lambda t: (0, 0)),
                 pl.BlockSpec((c_pad, h0_pad), lambda t: (0, 0))]

    vmem = _vmem_limit(
        tile_bytes=[tm * rel_p.shape[1] * 4, tm * 4],
        const_bytes=[int(a.size) * 4 for a in const_args],
        scratch_bytes=c_pad * e_pool_pad * 4,
        out_bytes=[c_pad * e_g_pad * 4, c_pad * h0_pad * 4])

    return pl.pallas_call(
        functools.partial(_nb_enc_kernel, n_pt=len(pt_pad), n_gl=len(gl_pad),
                          mean=mean, leaky=leaky, cdt=cdt, e_live=e_live),
        out_shape=out_shape,
        grid_spec=pltpu.PrefetchScalarGridSpec(
            num_scalar_prefetch=0,
            grid=grid,
            in_specs=in_specs,
            out_specs=out_specs,
            scratch_shapes=[pltpu.VMEM((c_pad, e_pool_pad), jnp.float32)],
        ),
        compiler_params=pltpu.CompilerParams(
            dimension_semantics=("arbitrary",),      # resident accumulator/output
            vmem_limit_bytes=vmem,
        ),
    )(*args)


# ----------------------------------------------------------------------------
# Kernel 2: fused gather + fc MLP + segment pool + fc_global MLP
#   y0 = rel@W_rel + feat@W_feat + onehot@enc_proj + b0
#   (enc_proj = nb_enc @ W_enc is precomputed in kernel 1 -> no per-tile
#    recompute, no host concat)
# ----------------------------------------------------------------------------
def _encoder_kernel(*refs, n_fc_rest, n_gl, mean, leaky, cdt, d_live):
    i = 0
    rel_ref = refs[i]; i += 1
    feat_ref = refs[i]; i += 1
    clr_ref = refs[i]; i += 1          # (1, TM) int32
    clc_ref = refs[i]; i += 1          # (TM, 1) int32
    proj_ref = refs[i]; i += 1         # (C_pad, h0_pad) resident gather source
    wrel_ref = refs[i]; wfeat_ref = refs[i + 1]; b0_ref = refs[i + 2]
    i += 3
    fc_wb = [(refs[i + 2 * k], refs[i + 2 * k + 1]) for k in range(n_fc_rest)]
    i += 2 * n_fc_rest
    gl_wb = [(refs[i + 2 * k], refs[i + 2 * k + 1]) for k in range(n_gl)]
    i += 2 * n_gl
    out_ref = refs[i]; i += 1
    acc_ref = refs[i]; i += 1          # (C_pad, d_fc_pad)

    t = pl.program_id(0)
    c_pad = acc_ref.shape[0]
    tm = rel_ref.shape[0]

    @pl.when(t == 0)
    def _init():
        acc_ref[...] = (jnp.zeros_like(acc_ref) if mean
                        else jnp.full_like(acc_ref, -jnp.inf))

    # one-hot masks (padded rows carry an out-of-range id -> all-zero rows)
    cl_r = clr_ref[...]                                                  # (1, TM)
    cl_c = clc_ref[...]                                                  # (TM, 1)
    oh_ct = jax.lax.broadcasted_iota(jnp.int32, (c_pad, tm), 0) == cl_r  # (C_pad, TM)
    oh_pts = (jax.lax.broadcasted_iota(jnp.int32, (tm, c_pad), 1) == cl_c
              ).astype(cdt)                                              # (TM, C_pad)

    # first fc layer with split weights; gather fused as one-hot matmul on the
    # VMEM-resident precomputed projection
    y = jnp.dot(rel_ref[...].astype(cdt), wrel_ref[...].astype(cdt),
                preferred_element_type=jnp.float32)
    y = y + jnp.dot(feat_ref[...].astype(cdt), wfeat_ref[...].astype(cdt),
                    preferred_element_type=jnp.float32)
    y = y + jnp.dot(oh_pts, proj_ref[...].astype(cdt),
                    preferred_element_type=jnp.float32)                  # (TM, h0)
    h = _act(y + b0_ref[...], leaky)

    for w_ref, b_ref in fc_wb:
        h = _dot_act(h, w_ref[...], b_ref[...], leaky=leaky, cdt=cdt)

    # segment pool into the resident accumulator (single pass over points)
    _segment_pool_step(acc_ref, h, oh_ct, mean=mean, cdt=cdt, live=d_live)

    @pl.when(t == pl.num_programs(0) - 1)
    def _finalize():
        g = _finalize_pool(acc_ref[...], mean=mean)
        for w_ref, b_ref in gl_wb:
            g = _dot_act(g, w_ref[...], b_ref[...], leaky=leaky, cdt=cdt)
        out_ref[...] = g.astype(out_ref.dtype)


def _encoder_call(rel_p, feat_p, cl_row, cl_col, enc_proj, w_rel, w_feat, b0,
                  fc_rest, gl_params, *, mean, leaky, cdt, tm, d_live, d_fc_pad):
    n_pad = rel_p.shape[0]
    grid = (n_pad // tm,)
    c_pad = enc_proj.shape[0]
    d_out_pad = gl_params[-1][0].shape[1] if gl_params else d_fc_pad

    in_specs = [
        pl.BlockSpec((tm, rel_p.shape[1]), lambda t: (t, 0)),
        pl.BlockSpec((tm, feat_p.shape[1]), lambda t: (t, 0)),
        pl.BlockSpec((1, tm), lambda t: (0, t)),
        pl.BlockSpec((tm, 1), lambda t: (t, 0)),
    ]
    args = [rel_p, feat_p, cl_row, cl_col]
    const_args = [enc_proj, w_rel, w_feat, b0]
    for w, b in list(fc_rest) + list(gl_params):
        const_args.extend([w, b])
    for a in const_args:
        in_specs.append(pl.BlockSpec(a.shape, lambda t: (0, 0)))
    args.extend(const_args)

    vmem = _vmem_limit(
        tile_bytes=[tm * rel_p.shape[1] * 4, tm * feat_p.shape[1] * 4,
                    tm * 4, tm * 4],
        const_bytes=[int(a.size) * 4 for a in const_args],
        scratch_bytes=c_pad * d_fc_pad * 4,
        out_bytes=[c_pad * d_out_pad * 4])

    return pl.pallas_call(
        functools.partial(_encoder_kernel, n_fc_rest=len(fc_rest),
                          n_gl=len(gl_params), mean=mean, leaky=leaky,
                          cdt=cdt, d_live=d_live),
        out_shape=jax.ShapeDtypeStruct((c_pad, d_out_pad), jnp.float32),
        grid_spec=pltpu.PrefetchScalarGridSpec(
            num_scalar_prefetch=0,
            grid=grid,
            in_specs=in_specs,
            out_specs=pl.BlockSpec((c_pad, d_out_pad), lambda t: (0, 0)),
            scratch_shapes=[pltpu.VMEM((c_pad, d_fc_pad), jnp.float32)],
        ),
        compiler_params=pltpu.CompilerParams(
            dimension_semantics=("arbitrary",),
            vmem_limit_bytes=vmem,
        ),
    )(*args)


# ----------------------------------------------------------------------------
# Parameter construction (deterministic, synthetic — no checkpoint loading)
# ----------------------------------------------------------------------------
def make_linear(key, din, dout):
    kw, kb = jax.random.split(key)
    scale = 1.0 / jnp.sqrt(jnp.float32(din))
    w = jax.random.uniform(kw, (din, dout), jnp.float32, -scale, scale)
    b = jax.random.uniform(kb, (1, dout), jnp.float32, -scale, scale)
    return w, b


def make_params(key, input_size, enc_point_mlp, enc_global_mlp,
                nbs_features, nbs_features_global):
    keys = iter(jax.random.split(key, 16))
    params = {"enc_point": [], "enc_global": [], "fc": [], "fc_global": []}

    d = 3
    for nb in enc_point_mlp:
        params["enc_point"].append(make_linear(next(keys), d, nb))
        d = nb
    for nb in enc_global_mlp:
        params["enc_global"].append(make_linear(next(keys), d, nb))
        d = nb
    enc_out = d

    d = input_size + enc_out + 3          # cat([relative_points, features, enc_dup])
    for nb in nbs_features:
        params["fc"].append(make_linear(next(keys), d, nb))
        d = nb
    for nb in nbs_features_global:
        params["fc_global"].append(make_linear(next(keys), d, nb))
        d = nb
    return params


# ----------------------------------------------------------------------------
# Forward pass (2 fused pallas_calls)
# ----------------------------------------------------------------------------
def middle_layer_encoder_split(params, relative_points, features, cluster,
                               num_clusters, *, mean=False, leaky=False,
                               compute_dtype=jnp.float32, tile_rows=512):
    # tile_rows=512 is safe on all generations (v7x has 64 MiB VMEM);
    # on v5e/v6e (128 MiB) 1024-2048 amortizes per-tile overhead further.
    assert len(params["enc_point"]) >= 1, "need at least one point-MLP layer"
    assert len(params["fc"]) >= 1, "need at least one fc layer"

    n = relative_points.shape[0]
    f_dim = features.shape[1]
    tm, n_pad = _choose_tiling(n, tile_rows)
    c_pad = _round_up(num_clusters, 8)

    rel_p = _pad_rows(relative_points.astype(jnp.float32), n_pad)
    feat_p = _pad_rows(features.astype(jnp.float32), n_pad)
    # padded points get an out-of-range cluster id -> contribute to nothing
    cl_pad = jnp.pad(cluster.astype(jnp.int32), (0, n_pad - n),
                     constant_values=c_pad)
    cl_row = cl_pad.reshape(1, n_pad)
    cl_col = cl_pad.reshape(n_pad, 1)

    # ---- lane-padded (128-aligned) parameter set; padding sliced off at end
    pt_pad, e_pool_real, e_pool_pad = _pad_chain(
        params["enc_point"], 3, 3, spare_last=mean)
    gl_enc_pad, e_g_real, e_g_pad = _pad_chain(
        params["enc_global"], e_pool_real, e_pool_pad, spare_last=False)

    fc = params["fc"]
    w0, b0 = fc[0]
    h0_real = w0.shape[1]
    h0_pad = _pad_feat(h0_real, mean and len(fc) == 1)
    w_rel = jnp.zeros((3, h0_pad), jnp.float32).at[:, :h0_real].set(w0[:3])
    w_feat = jnp.zeros((f_dim, h0_pad), jnp.float32
                       ).at[:, :h0_real].set(w0[3:3 + f_dim])
    w_enc = jnp.zeros((e_g_pad, h0_pad), jnp.float32
                      ).at[:e_g_real, :h0_real].set(w0[3 + f_dim:])
    b0_pad = jnp.zeros((1, h0_pad), jnp.float32).at[:, :h0_real].set(b0)

    fc_rest_pad, d_fc_real, d_fc_pad = _pad_chain(
        fc[1:], h0_real, h0_pad, spare_last=mean)
    gl_pad, d_out_real, d_out_pad = _pad_chain(
        params["fc_global"], d_fc_real, d_fc_pad, spare_last=False)

    e_live = _round_up(e_pool_real, 8)
    d_live = _round_up(d_fc_real, 8)

    # Kernel 1: neighborhoods_encoding (+ hoisted enc projection)
    nb_enc_pad, enc_proj = _nb_enc_call(
        rel_p, cl_row, pt_pad, gl_enc_pad, w_enc, c_pad,
        mean=mean, leaky=leaky, cdt=compute_dtype, tm=tm, e_live=e_live)

    # Kernel 2: gather + fc chain + global pool + fc_global chain
    out_global_pad = _encoder_call(
        rel_p, feat_p, cl_row, cl_col, enc_proj, w_rel, w_feat, b0_pad,
        fc_rest_pad, gl_pad,
        mean=mean, leaky=leaky, cdt=compute_dtype, tm=tm,
        d_live=d_live, d_fc_pad=d_fc_pad)

    # final tiny (C, e_g + d_out) concat stays on the host (pad sliced off)
    return jnp.concatenate(
        [nb_enc_pad[:num_clusters, :e_g_real],
         out_global_pad[:num_clusters, :d_out_real]], axis=1)


# ----------------------------------------------------------------------------
# Pure-JAX reference for correctness checking
# ----------------------------------------------------------------------------
def reference_forward(params, relative_points, features, cluster, num_clusters,
                      *, mean=False, leaky=False):
    def pool(x):
        cnt = jax.ops.segment_sum(jnp.ones((x.shape[0], 1), jnp.float32), cluster,
                                  num_segments=num_clusters)
        if mean:
            s = jax.ops.segment_sum(x, cluster, num_segments=num_clusters)
            return s / jnp.maximum(cnt, 1.0)
        m = jax.ops.segment_max(x, cluster, num_segments=num_clusters)
        return jnp.where(cnt > 0, m, 0.0)

    h = relative_points
    for w, b in params["enc_point"]:
        h = _act(h @ w + b, leaky)
    nb_enc = pool(h)
    for w, b in params["enc_global"]:
        nb_enc = _act(nb_enc @ w + b, leaky)

    encoded = jnp.concatenate([relative_points, features, nb_enc[cluster]], axis=1)
    for w, b in params["fc"]:
        encoded = _act(encoded @ w + b, leaky)
    g = pool(encoded)
    for w, b in params["fc_global"]:
        g = _act(g @ w + b, leaky)
    return jnp.concatenate([nb_enc, g], axis=1)


# ----------------------------------------------------------------------------
if __name__ == "__main__":
    key = jax.random.PRNGKey(0)
    k_param, k_pts, k_feat = jax.random.split(key, 3)

    # small synthetic problem: 320 points, 4 clusters (interleaved assignment)
    num_clusters = 4
    n_points = 320
    input_size = 6                       # per-point feature channels
    enc_point_mlp = [16, 16]             # synthetic neighborhood_enc point MLP
    enc_global_mlp = [8]                 # -> neighborhood_enc.get_output_size()=8
    nbs_features = [32, 16]
    nbs_features_global = [16, 12]

    params = make_params(k_param, input_size, enc_point_mlp, enc_global_mlp,
                         nbs_features, nbs_features_global)

    relative_points = jax.random.normal(k_pts, (n_points, 3), jnp.float32)
    features = jax.random.normal(k_feat, (n_points, input_size), jnp.float32)
    cluster = jnp.arange(n_points, dtype=jnp.int32) % num_clusters

    out_dim = enc_global_mlp[-1] + nbs_features_global[-1]

    ref_max = reference_forward(params, relative_points, features, cluster,
                                num_clusters, mean=False, leaky=False)
    ref_mean = reference_forward(params, relative_points, features, cluster,
                                 num_clusters, mean=True, leaky=True)

    # 1) max pool + relu, multi-tile grid (tile_rows=128 -> 3 point tiles), f32
    out = middle_layer_encoder_split(params, relative_points, features, cluster,
                                     num_clusters, mean=False, leaky=False,
                                     tile_rows=128)
    out = jax.block_until_ready(out)
    assert out.shape == (num_clusters, out_dim)
    assert jnp.allclose(out, ref_max, atol=1e-3, rtol=1e-3), "max/relu mismatch"

    # 2) mean pool + leaky relu, multi-tile grid (count accumulates across tiles)
    out_m = middle_layer_encoder_split(params, relative_points, features, cluster,
                                       num_clusters, mean=True, leaky=True,
                                       tile_rows=128)
    out_m = jax.block_until_ready(out_m)
    assert jnp.allclose(out_m, ref_mean, atol=1e-3, rtol=1e-3), "mean/leaky mismatch"

    # 3) max pool + relu, default tile_rows (single point tile), f32
    out_s = middle_layer_encoder_split(params, relative_points, features, cluster,
                                       num_clusters, mean=False, leaky=False)
    out_s = jax.block_until_ready(out_s)
    assert jnp.allclose(out_s, ref_max, atol=1e-3, rtol=1e-3), "single-tile mismatch"

    # 4) bf16 matmul inputs (f32 accumulation) — loose check vs f32 reference
    out_bf = middle_layer_encoder_split(params, relative_points, features, cluster,
                                        num_clusters, mean=False, leaky=False,
                                        compute_dtype=jnp.bfloat16, tile_rows=128)
    out_bf = jax.block_until_ready(out_bf)
    assert bool(jnp.all(jnp.isfinite(out_bf)))
    assert jnp.allclose(out_bf, ref_max, atol=2e-1, rtol=2e-1), "bf16 mismatch"

    print("KERNEL_OK")
</pallas_src>

<mosaic_0001>
module attributes {stable_mosaic.version = 11 : i64} {
  func.func @_nb_enc_kernel(%arg0: i32, %arg1: memref<128x3xf32, #tpu.memory_space<vmem>>, %arg2: memref<1x128xi32, #tpu.memory_space<vmem>>, %arg3: memref<3x128xf32, #tpu.memory_space<vmem>>, %arg4: memref<1x128xf32, #tpu.memory_space<vmem>>, %arg5: memref<128x128xf32, #tpu.memory_space<vmem>>, %arg6: memref<1x128xf32, #tpu.memory_space<vmem>>, %arg7: memref<128x128xf32, #tpu.memory_space<vmem>>, %arg8: memref<1x128xf32, #tpu.memory_space<vmem>>, %arg9: memref<128x128xf32, #tpu.memory_space<vmem>>, %arg10: memref<8x128xf32, #tpu.memory_space<vmem>>, %arg11: memref<8x128xf32, #tpu.memory_space<vmem>>, %arg12: memref<8x128xf32, #tpu.memory_space<vmem>>) attributes {dimension_semantics = [#tpu.dimension_semantics<arbitrary>], iteration_bounds = array<i64: 3>, scalar_prefetch = 0 : i64, scratch_operands = 1 : i64, tpu.core_type = #tpu.core_type<tc>, window_params = [{transform_indices = @transform_0, window_bounds = array<i64: 128, 3>}, {transform_indices = @transform_1, window_bounds = array<i64: 1, 128>}, {pipeline_mode = #tpu.pipeline_mode<synchronous>, transform_indices = @transform_2, window_bounds = array<i64: 3, 128>}, {pipeline_mode = #tpu.pipeline_mode<synchronous>, transform_indices = @transform_3, window_bounds = array<i64: 1, 128>}, {pipeline_mode = #tpu.pipeline_mode<synchronous>, transform_indices = @transform_4, window_bounds = array<i64: 128, 128>}, {pipeline_mode = #tpu.pipeline_mode<synchronous>, transform_indices = @transform_5, window_bounds = array<i64: 1, 128>}, {pipeline_mode = #tpu.pipeline_mode<synchronous>, transform_indices = @transform_6, window_bounds = array<i64: 128, 128>}, {pipeline_mode = #tpu.pipeline_mode<synchronous>, transform_indices = @transform_7, window_bounds = array<i64: 1, 128>}, {pipeline_mode = #tpu.pipeline_mode<synchronous>, transform_indices = @transform_8, window_bounds = array<i64: 128, 128>}, {pipeline_mode = #tpu.pipeline_mode<synchronous>, transform_indices = @transform_9, window_bounds = array<i64: 8, 128>}, {pipeline_mode = #tpu.pipeline_mode<synchronous>, transform_indices = @transform_10, window_bounds = array<i64: 8, 128>}]} {
    %c0_i32 = arith.constant 0 : i32
    %0 = arith.cmpi eq, %arg0, %c0_i32 : i32
    %1 = arith.extui %0 : i1 to i32
    %c0_i32_0 = arith.constant 0 : i32
    %2 = arith.cmpi ne, %1, %c0_i32_0 : i32
    scf.if %2 {
      %cst_22 = arith.constant 0xFF800000 : f32
      %39 = vector.broadcast %cst_22 : f32 to vector<8x128xf32>
      %c0_23 = arith.constant 0 : index
      %c0_24 = arith.constant 0 : index
      %40 = vector.load %arg12[%c0_23, %c0_24] : memref<8x128xf32, #tpu.memory_space<vmem>>, vector<8x128xf32>
      tpu.vector_store %arg12[%c0_23, %c0_24], %39 {strides = array<i32>} : memref<8x128xf32, #tpu.memory_space<vmem>>, vector<8x128xf32>,
    } else {
    }
    %c0 = arith.constant 0 : index
    %c0_1 = arith.constant 0 : index
    %3 = vector.load %arg1[%c0, %c0_1] : memref<128x3xf32, #tpu.memory_space<vmem>>, vector<128x3xf32>
    %c0_2 = arith.constant 0 : index
    %c0_3 = arith.constant 0 : index
    %4 = vector.load %arg3[%c0_2, %c0_3] : memref<3x128xf32, #tpu.memory_space<vmem>>, vector<3x128xf32>
    %c0_4 = arith.constant 0 : index
    %c0_5 = arith.constant 0 : index
    %5 = vector.load %arg4[%c0_4, %c0_5] : memref<1x128xf32, #tpu.memory_space<vmem>>, vector<1x128xf32>
    %cst = arith.constant dense<0.000000e+00> : vector<128x128xf32>
    %6 = tpu.matmul %3, %4, %cst {dimension_numbers = #tpu.dot_dimension_numbers<[1], [0], [0], [1], [0, 0, 1, 1], [], []>} : vector<128x3xf32>, vector<3x128xf32>, vector<128x128xf32> -> vector<128x128xf32>
    %7 = vector.broadcast %5 : vector<1x128xf32> to vector<128x128xf32>
    %8 = arith.addf %6, %7 : vector<128x128xf32>
    %cst_6 = arith.constant 0.000000e+00 : f32
    %9 = vector.broadcast %cst_6 : f32 to vector<128x128xf32>
    %10 = arith.maximumf %8, %9 : vector<128x128xf32>
    %c0_7 = arith.constant 0 : index
    %c0_8 = arith.constant 0 : index
    %11 = vector.load %arg5[%c0_7, %c0_8] : memref<128x128xf32, #tpu.memory_space<vmem>>, vector<128x128xf32>
    %c0_9 = arith.constant 0 : index
    %c0_10 = arith.constant 0 : index
    %12 = vector.load %arg6[%c0_9, %c0_10] : memref<1x128xf32, #tpu.memory_space<vmem>>, vector<1x128xf32>
    %cst_11 = arith.constant dense<0.000000e+00> : vector<128x128xf32>
    %13 = tpu.matmul %10, %11, %cst_11 {dimension_numbers = #tpu.dot_dimension_numbers<[1], [0], [0], [1], [0, 0, 1, 1], [], []>} : vector<128x128xf32>, vector<128x128xf32>, vector<128x128xf32> -> vector<128x128xf32>
    %14 = vector.broadcast %12 : vector<1x128xf32> to vector<128x128xf32>
    %15 = arith.addf %13, %14 : vector<128x128xf32>
    %cst_12 = arith.constant 0.000000e+00 : f32
    %16 = vector.broadcast %cst_12 : f32 to vector<128x128xf32>
    %17 = arith.maximumf %15, %16 : vector<128x128xf32>
    %c0_13 = arith.constant 0 : index
    %c0_14 = arith.constant 0 : index
    %18 = vector.load %arg2[%c0_13, %c0_14] : memref<1x128xi32, #tpu.memory_space<vmem>>, vector<1x128xi32>
    %19 = tpu.iota {dimensions = array<i32: 0>} : vector<8x128xi32>
    %20 = vector.broadcast %18 : vector<1x128xi32> to vector<8x128xi32>
    %21 = arith.cmpi eq, %19, %20 : vector<8x128xi32>
    %22 = tpu.transpose %17, [1, 0] : vector<128x128xf32> -> vector<128x128xf32>
    %23 = vector.extract_strided_slice %22 {offsets = [0, 0], sizes = [16, 128], strides = [1, 1]} : vector<128x128xf32> to vector<16x128xf32>
    %24 = vector.shape_cast %21 : vector<8x128xi1> to vector<8x1x128xi1>
    %25 = vector.shape_cast %23 : vector<16x128xf32> to vector<1x16x128xf32>
    %cst_15 = arith.constant 0xFF800000 : f32
    %26 = vector.shape_cast %24 : vector<8x1x128xi1> to vector<8x1x128xi1>
    %27 = vector.broadcast %26 : vector<8x1x128xi1> to vector<8x16x128xi1>
    %28 = vector.shape_cast %25 : vector<1x16x128xf32> to vector<1x16x128xf32>
    %29 = vector.broadcast %28 : vector<1x16x128xf32> to vector<8x16x128xf32>
    %30 = vector.broadcast %cst_15 : f32 to vector<8x16x128xf32>
    %31 = arith.select %27, %29, %30 : vector<8x16x128xi1>, vector<8x16x128xf32>
    %cst_16 = arith.constant dense<0xFF800000> : vector<8x16xf32>
    %32 = vector.multi_reduction <maximumf>, %31, %cst_16 [2] : vector<8x16x128xf32> to vector<8x16xf32>
    %c0_17 = arith.constant 0 : index
    %c0_18 = arith.constant 0 : index
    %33 = vector.load %arg12[%c0_17, %c0_18] : memref<8x128xf32, #tpu.memory_space<vmem>>, vector<8x16xf32>
    %34 = arith.maximumf %33, %32 : vector<8x16xf32>
    %c0_19 = arith.constant 0 : index
    %c0_20 = arith.constant 0 : index
    %35 = vector.load %arg12[%c0_19, %c0_20] : memref<8x128xf32, #tpu.memory_space<vmem>>, vector<8x16xf32>
    tpu.vector_store %arg12[%c0_19, %c0_20], %34 {strides = array<i32>} : memref<8x128xf32, #tpu.memory_space<vmem>>, vector<8x16xf32>,
    %c2_i32 = arith.constant 2 : i32
    %36 = arith.cmpi eq, %arg0, %c2_i32 : i32
    %37 = arith.extui %36 : i1 to i32
    %c0_i32_21 = arith.constant 0 : i32
    %38 = arith.cmpi ne, %37, %c0_i32_21 : i32
    scf.if %38 {
      %c0_22 = arith.constant 0 : index
      %c0_23 = arith.constant 0 : index
      %39 = vector.load %arg12[%c0_22, %c0_23] : memref<8x128xf32, #tpu.memory_space<vmem>>, vector<8x128xf32>
      %cst_24 = arith.constant 0xFF800000 : f32
      %40 = vector.broadcast %cst_24 : f32 to vector<8x128xf32>
      %41 = arith.cmpf ogt, %39, %40 : vector<8x128xf32>
      %cst_25 = arith.constant 0.000000e+00 : f32
      %42 = vector.broadcast %cst_25 : f32 to vector<8x128xf32>
      %43 = arith.select %41, %39, %42 : vector<8x128xi1>, vector<8x128xf32>
      %c0_26 = arith.constant 0 : index
      %c0_27 = arith.constant 0 : index
      %44 = vector.load %arg7[%c0_26, %c0_27] : memref<128x128xf32, #tpu.memory_space<vmem>>, vector<128x128xf32>
      %c0_28 = arith.constant 0 : index
      %c0_29 = arith.constant 0 : index
      %45 = vector.load %arg8[%c0_28, %c0_29] : memref<1x128xf32, #tpu.memory_space<vmem>>, vector<1x128xf32>
      %cst_30 = arith.constant dense<0.000000e+00> : vector<8x128xf32>
      %46 = tpu.matmul %43, %44, %cst_30 {dimension_numbers = #tpu.dot_dimension_numbers<[1], [0], [0], [1], [0, 0, 1, 1], [], []>} : vector<8x128xf32>, vector<128x128xf32>, vector<8x128xf32> -> vector<8x128xf32>
      %47 = vector.broadcast %45 : vector<1x128xf32> to vector<8x128xf32>
      %48 = arith.addf %46, %47 : vector<8x128xf32>
      %cst_31 = arith.constant 0.000000e+00 : f32
      %49 = vector.broadcast %cst_31 : f32 to vector<8x128xf32>
      %50 = arith.maximumf %48, %49 : vector<8x128xf32>
      %c0_32 = arith.constant 0 : index
      %c0_33 = arith.constant 0 : index
      %51 = vector.load %arg10[%c0_32, %c0_33] : memref<8x128xf32, #tpu.memory_space<vmem>>, vector<8x128xf32>
      tpu.vector_store %arg10[%c0_32, %c0_33], %50 {strides = array<i32>} : memref<8x128xf32, #tpu.memory_space<vmem>>, vector<8x128xf32>,
      %c0_34 = arith.constant 0 : index
      %c0_35 = arith.constant 0 : index
      %52 = vector.load %arg9[%c0_34, %c0_35] : memref<128x128xf32, #tpu.memory_space<vmem>>, vector<128x128xf32>
      %cst_36 = arith.constant dense<0.000000e+00> : vector<8x128xf32>
      %53 = tpu.matmul %50, %52, %cst_36 {dimension_numbers = #tpu.dot_dimension_numbers<[1], [0], [0], [1], [0, 0, 1, 1], [], []>} : vector<8x128xf32>, vector<128x128xf32>, vector<8x128xf32> -> vector<8x128xf32>
      %c0_37 = arith.constant 0 : index
      %c0_38 = arith.constant 0 : index
      %54 = vector.load %arg11[%c0_37, %c0_38] : memref<8x128xf32, #tpu.memory_space<vmem>>, vector<8x128xf32>
      tpu.vector_store %arg11[%c0_37, %c0_38], %53 {strides = array<i32>} : memref<8x128xf32, #tpu.memory_space<vmem>>, vector<8x128xf32>,
    } else {
    }
    return
  }
  func.func @transform_0(%arg0: i32) -> (i32, i32) {
    %c0_i32 = arith.constant 0 : i32
    %c0_i32_0 = arith.constant 0 : i32
    return %arg0, %c0_i32 : i32, i32
  }
  func.func @transform_1(%arg0: i32) -> (i32, i32) {
    %c0_i32 = arith.constant 0 : i32
    %c0_i32_0 = arith.constant 0 : i32
    return %c0_i32, %arg0 : i32, i32
  }
  func.func @transform_2(%arg0: i32) -> (i32, i32) {
    %c0_i32 = arith.constant 0 : i32
    %c0_i32_0 = arith.constant 0 : i32
    %c0_i32_1 = arith.constant 0 : i32
    return %c0_i32, %c0_i32_0 : i32, i32
  }
  func.func @transform_3(%arg0: i32) -> (i32, i32) {
    %c0_i32 = arith.constant 0 : i32
    %c0_i32_0 = arith.constant 0 : i32
    %c0_i32_1 = arith.constant 0 : i32
    return %c0_i32, %c0_i32_0 : i32, i32
  }
  func.func @transform_4(%arg0: i32) -> (i32, i32) {
    %c0_i32 = arith.constant 0 : i32
    %c0_i32_0 = arith.constant 0 : i32
    %c0_i32_1 = arith.constant 0 : i32
    return %c0_i32, %c0_i32_0 : i32, i32
  }
  func.func @transform_5(%arg0: i32) -> (i32, i32) {
    %c0_i32 = arith.constant 0 : i32
    %c0_i32_0 = arith.constant 0 : i32
    %c0_i32_1 = arith.constant 0 : i32
    return %c0_i32, %c0_i32_0 : i32, i32
  }
  func.func @transform_6(%arg0: i32) -> (i32, i32) {
    %c0_i32 = arith.constant 0 : i32
    %c0_i32_0 = arith.constant 0 : i32
    %c0_i32_1 = arith.constant 0 : i32
    return %c0_i32, %c0_i32_0 : i32, i32
  }
  func.func @transform_7(%arg0: i32) -> (i32, i32) {
    %c0_i32 = arith.constant 0 : i32
    %c0_i32_0 = arith.constant 0 : i32
    %c0_i32_1 = arith.constant 0 : i32
    return %c0_i32, %c0_i32_0 : i32, i32
  }
  func.func @transform_8(%arg0: i32) -> (i32, i32) {
    %c0_i32 = arith.constant 0 : i32
    %c0_i32_0 = arith.constant 0 : i32
    %c0_i32_1 = arith.constant 0 : i32
    return %c0_i32, %c0_i32_0 : i32, i32
  }
  func.func @transform_9(%arg0: i32) -> (i32, i32) {
    %c0_i32 = arith.constant 0 : i32
    %c0_i32_0 = arith.constant 0 : i32
    %c0_i32_1 = arith.constant 0 : i32
    return %c0_i32, %c0_i32_0 : i32, i32
  }
  func.func @transform_10(%arg0: i32) -> (i32, i32) {
    %c0_i32 = arith.constant 0 : i32
    %c0_i32_0 = arith.constant 0 : i32
    %c0_i32_1 = arith.constant 0 : i32
    return %c0_i32, %c0_i32_0 : i32, i32
  }
}

</mosaic_0001>

<llo_original>
// kernel: tpu_custom_call.1
$region0: #{tpu_custom_call.1}
  #allocation0 [shape = 'u32[]', space=smem, size = 0x4, offset = 0x4, fixed_abs, tag = 'smem constant byte address 0x4 - core index']
  #allocation1 [shape = 'u32[144,128]{1,0:T(1,128)}', space=vmem, size = 0x12000, scoped, tag = 'internal scratch']
  #allocation2 [shape = 'f32[8,128]{1,0:T(8,128)}', space=vmem, size = 0x1000, scoped, tag = 'scratch operand']
  %s0 = inlined_call_operand.vmem [shape: f32[384,3], index: 0, kind: input, shape index: {}]
  %s1 = inlined_call_operand.vmem [shape: s32[1,384], index: 1, kind: input, shape index: {}]
  %s2 = inlined_call_operand.vmem [shape: f32[3,128], index: 2, kind: input, shape index: {}]
  %s3 = inlined_call_operand.vmem [shape: f32[1,128], index: 3, kind: input, shape index: {}]
  %s4 = inlined_call_operand.vmem [shape: f32[128,128], index: 4, kind: input, shape index: {}]
  %s5 = inlined_call_operand.vmem [shape: f32[1,128], index: 5, kind: input, shape index: {}]
  %s6 = inlined_call_operand.vmem [shape: f32[128,128], index: 6, kind: input, shape index: {}]
  %s7 = inlined_call_operand.vmem [shape: f32[1,128], index: 7, kind: input, shape index: {}]
  %s8 = inlined_call_operand.vmem [shape: f32[128,128], index: 8, kind: input, shape index: {}]
  %s9 = inlined_call_operand.hbm [shape: f32[8,128], index: 9, kind: output, shape index: {0}]
  %s10 = inlined_call_operand.hbm [shape: f32[8,128], index: 10, kind: output, shape index: {1}]
  %11 = xla_tuple %s9, %s10
  %s12 = sld [smem:[#allocation0]]
  $region85: #{tpu_custom_call.1} parent=0
    _
  %s14 = ssub.s32 1, %s12
  %s15 = scalar_select 0, %s14, %s12
  $region1: #{tpu_custom_call.1} parent=0
    #allocation3 [shape = 'u8[4096]{0}', space=vmem, size = 0x1000, scoped, tag = 'output window, operand 0, single buffered']
    #allocation4 [shape = 's32[2]{0}', space=sflag, size = 0x8, scoped, tag = 'scoped memory for tpu_custom_call.1']
    #allocation5 [shape = 'u8[4096]{0}', space=vmem, size = 0x1000, scoped, tag = 'output window, operand 1, single buffered']
    #allocation6 [shape = 's32[1]{0}', space=sflag, size = 0x4, scoped, tag = 'scoped memory for tpu_custom_call.1']
    %16 = vsyncpa [#allocation4], 0
    %17 = vsyncpa [#allocation6], 0
    loop: start=0, step=1, limit=5
    $region2: #{tpu_custom_call.1} parent=1 // loop_pre_header
      _
    $region3: #{tpu_custom_call.1} parent=1 // loop_header
      %s19 = sphi 0, %s23
      %p20 = scmp.ge.s32.totalorder %s19, 5
      %s29 = sphi 0, %s31
      %s32 = sphi 0, %s29
      %s33 = sphi 0, %s32
      %s49 = sphi 0, %s33
      %s55 = sphi 0, %s57
      %s58 = sphi 0, %s55
      %s59 = sphi 0, %s58
      %s75 = sphi 0, %s59
      %s79 = sphi 0, %s79
      %s81 = sphi 0, %s79
      %s82 = sphi 0, %s81
      %s96 = sphi 0, %s82
      %s100 = sphi 0, %s100
      %s102 = sphi 0, %s100
      %s103 = sphi 0, %s102
      %s117 = sphi 0, %s103
      %s121 = sphi 0, %s121
      %s123 = sphi 0, %s121
      %s124 = sphi 0, %s123
      %s138 = sphi 0, %s124
      %s142 = sphi 0, %s142
      %s144 = sphi 0, %s142
      %s145 = sphi 0, %s144
      %s159 = sphi 0, %s145
      %s163 = sphi 0, %s163
      %s165 = sphi 0, %s163
      %s166 = sphi 0, %s165
      %s180 = sphi 0, %s166
      %s184 = sphi 0, %s184
      %s186 = sphi 0, %s184
      %s187 = sphi 0, %s186
      %s201 = sphi 0, %s187
      %s205 = sphi 0, %s205
      %s207 = sphi 0, %s205
      %s208 = sphi 0, %s207
      %s222 = sphi 0, %s208
      %s226 = sphi 0, %s226
      %s228 = sphi 0, %s226
      %s229 = sphi 0, %s228
      %s243 = sphi 0, %s229
      %s247 = sphi 0, %s247
      %s249 = sphi 0, %s247
      %s250 = sphi 0, %s249
      %s264 = sphi 0, %s250
    $region4: #{tpu_custom_call.1} parent=1 // loop_header_branch
      %22 = sbr.rel (%p20) target = $region8
    $region5: #{tpu_custom_call.1} parent=1 // loop_body
      %s24 = ssub.s32 %s19, 1
      %s25 = ssub.s32 %s19, 2
      %s26 = sadd.s32 %s19, 1
      %s27 = ssub.s32 %s19, %s26
      %p28 = scmp.eq.s32.totalorder %s27, 0
      %s30 = sadd.s32 %s29, 1
      %s31 = scalar_select %p28, %s29, %s30
      %p34 = pneg %p28
      %p35 = scmp.eq.s32.totalorder %s19, 2
      %p36 = por %p34, %p35
      %p37 = scmp.ne.s32.totalorder %s29, %s32
      %p38 = scmp.eq.s32.totalorder %s19, 0
      %p39 = por %p37, %p38
      %p40 = scmp.ne.s32.totalorder %s29, %s32
      %p41 = scmp.eq.s32.totalorder %s24, 2
      %p42 = por %p40, %p41
      %p43 = scmp.ne.s32.totalorder %s32, %s33
      %p44 = scmp.eq.s32.totalorder %s24, 0
      %p45 = por %p43, %p44
      %p46 = scmp.ne.s32.totalorder %s32, %s33
      %p47 = scmp.eq.s32.totalorder %s25, 2
      %p48 = por %p46, %p47
      %p50 = scmp.ne.s32.totalorder %s33, %s49
      %p51 = scmp.eq.s32.totalorder %s25, 0
      %p52 = por %p50, %p51
      %s53 = ssub.s32 %s19, %s26
      %p54 = scmp.eq.s32.totalorder %s53, 0
      %s56 = sadd.s32 %s55, 1
      %s57 = scalar_select %p54, %s55, %s56
      %p60 = pneg %p54
      %p61 = scmp.eq.s32.totalorder %s19, 2
      %p62 = por %p60, %p61
      %p63 = scmp.ne.s32.totalorder %s55, %s58
      %p64 = scmp.eq.s32.totalorder %s19, 0
      %p65 = por %p63, %p64
      %p66 = scmp.ne.s32.totalorder %s55, %s58
      %p67 = scmp.eq.s32.totalorder %s24, 2
      %p68 = por %p66, %p67
      %p69 = scmp.ne.s32.totalorder %s58, %s59
      %p70 = scmp.eq.s32.totalorder %s24, 0
      %p71 = por %p69, %p70
      %p72 = scmp.ne.s32.totalorder %s58, %s59
      %p73 = scmp.eq.s32.totalorder %s25, 2
      %p74 = por %p72, %p73
      %p76 = scmp.ne.s32.totalorder %s59, %s75
      %p77 = scmp.eq.s32.totalorder %s25, 0
      %p78 = por %p76, %p77
      %s80 = sadd.s32 %s79, 1
      %p83 = scmp.eq.s32.totalorder %s19, 2
      %p84 = scmp.ne.s32.totalorder %s79, %s81
      %p85 = scmp.eq.s32.totalorder %s19, 0
      %p86 = por %p84, %p85
      %p87 = scmp.ne.s32.totalorder %s79, %s81
      %p88 = scmp.eq.s32.totalorder %s24, 2
      %p89 = por %p87, %p88
      %p90 = scmp.ne.s32.totalorder %s81, %s82
      %p91 = scmp.eq.s32.totalorder %s24, 0
      %p92 = por %p90, %p91
      %p93 = scmp.ne.s32.totalorder %s81, %s82
      %p94 = scmp.eq.s32.totalorder %s25, 2
      %p95 = por %p93, %p94
      %p97 = scmp.ne.s32.totalorder %s82, %s96
      %p98 = scmp.eq.s32.totalorder %s25, 0
      %p99 = por %p97, %p98
      %s101 = sadd.s32 %s100, 1
      %p104 = scmp.eq.s32.totalorder %s19, 2
      %p105 = scmp.ne.s32.totalorder %s100, %s102
      %p106 = scmp.eq.s32.totalorder %s19, 0
      %p107 = por %p105, %p106
      %p108 = scmp.ne.s32.totalorder %s100, %s102
      %p109 = scmp.eq.s32.totalorder %s24, 2
      %p110 = por %p108, %p109
      %p111 = scmp.ne.s32.totalorder %s102, %s103
      %p112 = scmp.eq.s32.totalorder %s24, 0
      %p113 = por %p111, %p112
      %p114 = scmp.ne.s32.totalorder %s102, %s103
      %p115 = scmp.eq.s32.totalorder %s25, 2
      %p116 = por %p114, %p115
      %p118 = scmp.ne.s32.totalorder %s103, %s117
      %p119 = scmp.eq.s32.totalorder %s25, 0
      %p120 = por %p118, %p119
      %s122 = sadd.s32 %s121, 1
      %p125 = scmp.eq.s32.totalorder %s19, 2
      %p126 = scmp.ne.s32.totalorder %s121, %s123
      %p127 = scmp.eq.s32.totalorder %s19, 0
      %p128 = por %p126, %p127
      %p129 = scmp.ne.s32.totalorder %s121, %s123
      %p130 = scmp.eq.s32.totalorder %s24, 2
      %p131 = por %p129, %p130
      %p132 = scmp.ne.s32.totalorder %s123, %s124
      %p133 = scmp.eq.s32.totalorder %s24, 0
      %p134 = por %p132, %p133
      %p135 = scmp.ne.s32.totalorder %s123, %s124
      %p136 = scmp.eq.s32.totalorder %s25, 2
      %p137 = por %p135, %p136
      %p139 = scmp.ne.s32.totalorder %s124, %s138
      %p140 = scmp.eq.s32.totalorder %s25, 0
      %p141 = por %p139, %p140
      %s143 = sadd.s32 %s142, 1
      %p146 = scmp.eq.s32.totalorder %s19, 2
      %p147 = scmp.ne.s32.totalorder %s142, %s144
      %p148 = scmp.eq.s32.totalorder %s19, 0
      %p149 = por %p147, %p148
      %p150 = scmp.ne.s32.totalorder %s142, %s144
      %p151 = scmp.eq.s32.totalorder %s24, 2
      %p152 = por %p150, %p151
      %p153 = scmp.ne.s32.totalorder %s144, %s145
      %p154 = scmp.eq.s32.totalorder %s24, 0
      %p155 = por %p153, %p154
      %p156 = scmp.ne.s32.totalorder %s144, %s145
      %p157 = scmp.eq.s32.totalorder %s25, 2
      %p158 = por %p156, %p157
      %p160 = scmp.ne.s32.totalorder %s145, %s159
      %p161 = scmp.eq.s32.totalorder %s25, 0
      %p162 = por %p160, %p161
      %s164 = sadd.s32 %s163, 1
      %p167 = scmp.eq.s32.totalorder %s19, 2
      %p168 = scmp.ne.s32.totalorder %s163, %s165
      %p169 = scmp.eq.s32.totalorder %s19, 0
      %p170 = por %p168, %p169
      %p171 = scmp.ne.s32.totalorder %s163, %s165
      %p172 = scmp.eq.s32.totalorder %s24, 2
      %p173 = por %p171, %p172
      %p174 = scmp.ne.s32.totalorder %s165, %s166
      %p175 = scmp.eq.s32.totalorder %s24, 0
      %p176 = por %p174, %p175
      %p177 = scmp.ne.s32.totalorder %s165, %s166
      %p178 = scmp.eq.s32.totalorder %s25, 2
      %p179 = por %p177, %p178
      %p181 = scmp.ne.s32.totalorder %s166, %s180
      %p182 = scmp.eq.s32.totalorder %s25, 0
      %p183 = por %p181, %p182
      %s185 = sadd.s32 %s184, 1
      %p188 = scmp.eq.s32.totalorder %s19, 2
      %p189 = scmp.ne.s32.totalorder %s184, %s186
      %p190 = scmp.eq.s32.totalorder %s19, 0
      %p191 = por %p189, %p190
      %p192 = scmp.ne.s32.totalorder %s184, %s186
      %p193 = scmp.eq.s32.totalorder %s24, 2
      %p194 = por %p192, %p193
      %p195 = scmp.ne.s32.totalorder %s186, %s187
      %p196 = scmp.eq.s32.totalorder %s24, 0
      %p197 = por %p195, %p196
      %p198 = scmp.ne.s32.totalorder %s186, %s187
      %p199 = scmp.eq.s32.totalorder %s25, 2
      %p200 = por %p198, %p199
      %p202 = scmp.ne.s32.totalorder %s187, %s201
      %p203 = scmp.eq.s32.totalorder %s25, 0
      %p204 = por %p202, %p203
      %s206 = sadd.s32 %s205, 1
      %p209 = scmp.eq.s32.totalorder %s19, 2
      %p210 = scmp.ne.s32.totalorder %s205, %s207
      %p211 = scmp.eq.s32.totalorder %s19, 0
      %p212 = por %p210, %p211
      %p213 = scmp.ne.s32.totalorder %s205, %s207
      %p214 = scmp.eq.s32.totalorder %s24, 2
      %p215 = por %p213, %p214
      %p216 = scmp.ne.s32.totalorder %s207, %s208
      %p217 = scmp.eq.s32.totalorder %s24, 0
      %p218 = por %p216, %p217
      %p219 = scmp.ne.s32.totalorder %s207, %s208
      %p220 = scmp.eq.s32.totalorder %s25, 2
      %p221 = por %p219, %p220
      %p223 = scmp.ne.s32.totalorder %s208, %s222
      %p224 = scmp.eq.s32.totalorder %s25, 0
      %p225 = por %p223, %p224
      %s227 = sadd.s32 %s226, 1
      %p230 = scmp.eq.s32.totalorder %s19, 2
      %p231 = scmp.ne.s32.totalorder %s226, %s228
      %p232 = scmp.eq.s32.totalorder %s19, 0
      %p233 = por %p231, %p232
      %p234 = scmp.ne.s32.totalorder %s226, %s228
      %p235 = scmp.eq.s32.totalorder %s24, 2
      %p236 = por %p234, %p235
      %p237 = scmp.ne.s32.totalorder %s228, %s229
      %p238 = scmp.eq.s32.totalorder %s24, 0
      %p239 = por %p237, %p238
      %p240 = scmp.ne.s32.totalorder %s228, %s229
      %p241 = scmp.eq.s32.totalorder %s25, 2
      %p242 = por %p240, %p241
      %p244 = scmp.ne.s32.totalorder %s229, %s243
      %p245 = scmp.eq.s32.totalorder %s25, 0
      %p246 = por %p244, %p245
      %s248 = sadd.s32 %s247, 1
      %p251 = scmp.eq.s32.totalorder %s19, 2
      %p252 = scmp.ne.s32.totalorder %s247, %s249
      %p253 = scmp.eq.s32.totalorder %s19, 0
      %p254 = por %p252, %p253
      %p255 = scmp.ne.s32.totalorder %s247, %s249
      %p256 = scmp.eq.s32.totalorder %s24, 2
      %p257 = por %p255, %p256
      %p258 = scmp.ne.s32.totalorder %s249, %s250
      %p259 = scmp.eq.s32.totalorder %s24, 0
      %p260 = por %p258, %p259
      %p261 = scmp.ne.s32.totalorder %s249, %s250
      %p262 = scmp.eq.s32.totalorder %s25, 2
      %p263 = por %p261, %p262
      %p265 = scmp.ne.s32.totalorder %s250, %s264
      %p266 = scmp.eq.s32.totalorder %s25, 0
      %p267 = por %p265, %p266
      %p268 = scmp.le.s32.totalorder 1, %s19
      %p269 = scmp.lt.s32.totalorder %s19, 4
      %p270 = pnand %p268, %p269
      %p271 = pneg %p270
      // Predicated region
      $region9: #{tpu_custom_call.1} parent=5 // pred_check
        _
      $region10: #{tpu_custom_call.1} parent=5 // pred_check_branch
        %273 = sbr.rel (%p270) target = $region12
      $region11: #{tpu_custom_call.1} parent=5 // pred_region
        %s274 = ssub.s32 %s19, 1
        // Predicated region
        $region13: #{tpu_custom_call.1} parent=11 // pred_check
          %p275 = pneg %p92
        $region14: #{tpu_custom_call.1} parent=11 // pred_check_branch
          %277 = sbr.rel (%p275) target = $region16
        $region15: #{tpu_custom_call.1} parent=11 // pred_region
          _
        $region16: #{tpu_custom_call.1} parent=11 // pred_fallthru
          _
        // Predicated region
        $region17: #{tpu_custom_call.1} parent=11 // pred_check
          %p278 = pneg %p113
        $region18: #{tpu_custom_call.1} parent=11 // pred_check_branch
          %280 = sbr.rel (%p278) target = $region20
        $region19: #{tpu_custom_call.1} parent=11 // pred_region
          _
        $region20: #{tpu_custom_call.1} parent=11 // pred_fallthru
          _
        // Predicated region
        $region21: #{tpu_custom_call.1} parent=11 // pred_check
          %p281 = pneg %p134
        $region22: #{tpu_custom_call.1} parent=11 // pred_check_branch
          %283 = sbr.rel (%p281) target = $region24
        $region23: #{tpu_custom_call.1} parent=11 // pred_region
          _
        $region24: #{tpu_custom_call.1} parent=11 // pred_fallthru
          _
        // Predicated region
        $region25: #{tpu_custom_call.1} parent=11 // pred_check
          %p284 = pneg %p155
        $region26: #{tpu_custom_call.1} parent=11 // pred_check_branch
          %286 = sbr.rel (%p284) target = $region28
        $region27: #{tpu_custom_call.1} parent=11 // pred_region
          _
        $region28: #{tpu_custom_call.1} parent=11 // pred_fallthru
          _
        // Predicated region
        $region29: #{tpu_custom_call.1} parent=11 // pred_check
          %p287 = pneg %p176
        $region30: #{tpu_custom_call.1} parent=11 // pred_check_branch
          %289 = sbr.rel (%p287) target = $region32
        $region31: #{tpu_custom_call.1} parent=11 // pred_region
          _
        $region32: #{tpu_custom_call.1} parent=11 // pred_fallthru
          _
        // Predicated region
        $region33: #{tpu_custom_call.1} parent=11 // pred_check
          %p290 = pneg %p197
        $region34: #{tpu_custom_call.1} parent=11 // pred_check_branch
          %292 = sbr.rel (%p290) target = $region36
        $region35: #{tpu_custom_call.1} parent=11 // pred_region
          _
        $region36: #{tpu_custom_call.1} parent=11 // pred_fallthru
          _
        // Predicated region
        $region37: #{tpu_custom_call.1} parent=11 // pred_check
          %p293 = pneg %p218
        $region38: #{tpu_custom_call.1} parent=11 // pred_check_branch
          %295 = sbr.rel (%p293) target = $region40
        $region39: #{tpu_custom_call.1} parent=11 // pred_region
          _
        $region40: #{tpu_custom_call.1} parent=11 // pred_fallthru
          _
      $region12: #{tpu_custom_call.1} parent=5 // pred_fallthru
        _
      %p296 = scmp.lt.s32.totalorder %s19, 3
      // Predicated region
      $region41: #{tpu_custom_call.1} parent=5 // pred_check
        %p297 = pneg %p296
      $region42: #{tpu_custom_call.1} parent=5 // pred_check_branch
        %299 = sbr.rel (%p297) target = $region44
      $region43: #{tpu_custom_call.1} parent=5 // pred_region
        // Predicated region
        $region45: #{tpu_custom_call.1} parent=43 // pred_check
          %p300 = pneg %p39
        $region46: #{tpu_custom_call.1} parent=43 // pred_check_branch
          %302 = sbr.rel (%p300) target = $region48
        $region47: #{tpu_custom_call.1} parent=43 // pred_region
          %s303 = smul.u32 16, %s19
          %p304 = scmp.lt.s32.totalorder %s303, 47
          %s305 = scalar_select %p304, %s303, 47
          %s306 = smul.addr %s305, 8
          %s307 = scalar_lea.vmem %s0, %s306
          %s308 = smul.u32 16, %s19
        $region48: #{tpu_custom_call.1} parent=43 // pred_fallthru
          _
        // Predicated region
        $region49: #{tpu_custom_call.1} parent=43 // pred_check
          %p309 = pneg %p65
        $region50: #{tpu_custom_call.1} parent=43 // pred_check_branch
          %311 = sbr.rel (%p309) target = $region52
        $region51: #{tpu_custom_call.1} parent=43 // pred_region
          %p312 = scmp.lt.s32.totalorder %s19, 2
          %s313 = scalar_select %p312, %s19, 2
          %s314 = scalar_lea.vmem %s1, %s313
        $region52: #{tpu_custom_call.1} parent=43 // pred_fallthru
          _
      $region44: #{tpu_custom_call.1} parent=5 // pred_fallthru
        _
      %p315 = scmp.le.s32.totalorder 1, %s19
      %p316 = scmp.lt.s32.totalorder %s19, 4
      %p317 = pnand %p315, %p316
      %p318 = pneg %p317
      // Predicated region
      $region53: #{tpu_custom_call.1} parent=5 // pred_check
        _
      $region54: #{tpu_custom_call.1} parent=5 // pred_check_branch
        %320 = sbr.rel (%p317) target = $region56
      $region55: #{tpu_custom_call.1} parent=5 // pred_region
        %s321 = ssub.s32 %s19, 1
        %s322 = smul.u32 16, %s24
        %p323 = scmp.lt.s32.totalorder %s322, 47
        %s324 = scalar_select %p323, %s322, 47
        %s325 = smul.addr %s324, 8
        %s326 = scalar_lea.vmem %s0, %s325
        %p327 = pneg %p45
        %p328 = pneg %p42
        %p329 = scmp.lt.s32.totalorder %s24, 2
        %s330 = scalar_select %p329, %s24, 2
        %s331 = scalar_lea.vmem %s1, %s330
        %p332 = pneg %p71
        %p333 = pneg %p68
        %p334 = pneg %p92
        %p335 = pneg %p89
        %p336 = pneg %p113
        %p337 = pneg %p110
        %p338 = pneg %p134
        %p339 = pneg %p131
        %p340 = pneg %p155
        %p341 = pneg %p152
        %p342 = pneg %p176
        %p343 = pneg %p173
        %p344 = pneg %p197
        %p345 = pneg %p194
        %p346 = pneg %p218
        %p347 = pneg %p215
        %p348 = pneg %p239
        %p349 = pneg %p236
        %p350 = pneg %p260
        %p351 = pneg %p257
        %s352 = smul.u32 16, %s24
        %p353 = scmp.lt.s32.totalorder %s352, 47
        %s354 = scalar_select %p353, %s352, 47
        %s355 = smul.addr %s354, 8
        %s356 = scalar_lea.vmem %s0, %s355
        %s357 = smul.u32 16, %s24
        %p358 = scmp.lt.s32.totalorder %s24, 2
        %s359 = scalar_select %p358, %s24, 2
        %s360 = scalar_lea.vmem %s1, %s359
        %p361 = scmp.eq.s32.totalorder %s24, 0
        // Predicated region
        $region57: #{tpu_custom_call.1} parent=55 // pred_check
          %p362 = pneg %p361
        $region58: #{tpu_custom_call.1} parent=55 // pred_check_branch
          %364 = sbr.rel (%p362) target = $region60
        $region59: #{tpu_custom_call.1} parent=55 // pred_region
          %365 = vst [vmem:[#allocation2] sm:$0xff] -inf
        $region60: #{tpu_custom_call.1} parent=55 // pred_fallthru
          _
        %v366 = vld [vmem:[%s356] sm:$0xff]
        %v367 = vld [vmem:[%s356 + $0x8] sm:$0xff]
        %v368 = vld [vmem:[%s356 + $0x10] sm:$0xff]
        %v369 = vld [vmem:[%s356 + $0x18] sm:$0xff]
        %v370 = vld [vmem:[%s356 + $0x20] sm:$0xff]
        %v371 = vld [vmem:[%s356 + $0x28] sm:$0xff]
        %v372 = vld [vmem:[%s356 + $0x30] sm:$0xff]
        %v373 = vld [vmem:[%s356 + $0x38] sm:$0xff]
        %v374 = vld [vmem:[%s356 + $0x40] sm:$0xff]
        %v375 = vld [vmem:[%s356 + $0x48] sm:$0xff]
        %v376 = vld [vmem:[%s356 + $0x50] sm:$0xff]
        %v377 = vld [vmem:[%s356 + $0x58] sm:$0xff]
        %v378 = vld [vmem:[%s356 + $0x60] sm:$0xff]
        %v379 = vld [vmem:[%s356 + $0x68] sm:$0xff]
        %v380 = vld [vmem:[%s356 + $0x70] sm:$0xff]
        %v381 = vld [vmem:[%s356 + $0x78] sm:$0xff]
        %v382 = vld [vmem:[%s2] sm:$0x7]
        %v383 = vld [vmem:[%s3] sm:$0x1]
        %v385 = vlaneseq
        %v386 = vshrl.u32 %v385, 7
        %v387 = vsub.s32 0, %v386
        %v388 = vrot.slane %v383, %v387
        %vm390 = vcmask 23552
        %v392 = vsel %vm390, %v366, 0
        %v395 = vsel %vm390, %v367, 0
        %v398 = vsel %vm390, %v368, 0
        %v401 = vsel %vm390, %v369, 0
        %v404 = vsel %vm390, %v370, 0
        %v407 = vsel %vm390, %v371, 0
        %v410 = vsel %vm390, %v372, 0
        %v413 = vsel %vm390, %v373, 0
        %v416 = vsel %vm390, %v374, 0
        %v419 = vsel %vm390, %v375, 0
        %v422 = vsel %vm390, %v376, 0
        %v425 = vsel %vm390, %v377, 0
        %v428 = vsel %vm390, %v378, 0
        %v431 = vsel %vm390, %v379, 0
        %v434 = vsel %vm390, %v380, 0
        %v437 = vsel %vm390, %v381, 0
        %vm439 = vcmask 1042432
        %v441 = vsel %vm439, %v382, 0
        %443 = vmatprep.subr.mxu0 0.0
        %444 = vmatpush1.msra.mxu0 %v441
        %445 = vmatprep.subr.mxu0 0.0
        %446 = vmatpush1.msra.mxu0 0.0
        %447 = vmatprep.subr.mxu0 0.0
        %448 = vmatpush1.msra.mxu0 0.0
        %449 = vmatprep.subr.mxu0 0.0
        %450 = vmatpush1.msra.mxu0 0.0
        %451 = vmatprep.subr.mxu0 0.0
        %452 = vmatpush1.msra.mxu0 0.0
        %453 = vmatprep.subr.mxu0 0.0
        %454 = vmatpush1.msra.mxu0 0.0
        %455 = vmatprep.subr.mxu0 0.0
        %456 = vmatpush1.msra.mxu0 0.0
        %457 = vmatprep.subr.mxu0 0.0
        %458 = vmatpush1.msra.mxu0 0.0
        %459 = vmatprep.subr.mxu0 0.0
        %460 = vmatpush1.msra.mxu0 0.0
        %461 = vmatprep.subr.mxu0 0.0
        %462 = vmatpush1.msra.mxu0 0.0
        %463 = vmatprep.subr.mxu0 0.0
        %464 = vmatpush1.msra.mxu0 0.0
        %465 = vmatprep.subr.mxu0 0.0
        %466 = vmatpush1.msra.mxu0 0.0
        %467 = vmatprep.subr.mxu0 0.0
        %468 = vmatpush1.msra.mxu0 0.0
        %469 = vmatprep.subr.mxu0 0.0
        %470 = vmatpush1.msra.mxu0 0.0
        %471 = vmatprep.subr.mxu0 0.0
        %472 = vmatpush1.msra.mxu0 0.0
        %473 = vmatprep.subr.mxu0 0.0
        %474 = vmatpush1.msra.mxu0 0.0
        %475 = vmatprep.subr.mxu0 0.0
        %476 = vmatpush1.msra.mxu0 0.0
        %477 = vmatprep.subr.mxu0 0.0
        %478 = vmatpush1.msra.mxu0 0.0
        %479 = vmatprep.subr.mxu0 0.0
        %480 = vmatpush1.msra.mxu0 0.0
        %481 = vmatprep.subr.mxu0 0.0
        %482 = vmatpush1.msra.mxu0 0.0
        %483 = vmatprep.subr.mxu0 0.0
        %484 = vmatpush1.msra.mxu0 0.0
        %485 = vmatprep.subr.mxu0 0.0
        %486 = vmatpush1.msra.mxu0 0.0
        %487 = vmatprep.subr.mxu0 0.0
        %488 = vmatpush1.msra.mxu0 0.0
        %489 = vmatprep.subr.mxu0 0.0
        %490 = vmatpush1.msra.mxu0 0.0
        %491 = vmatprep.subr.mxu0 0.0
        %492 = vmatpush1.msra.mxu0 0.0
        %493 = vmatprep.subr.mxu0 0.0
        %494 = vmatpush1.msra.mxu0 0.0
        %495 = vmatprep.subr.mxu0 0.0
        %496 = vmatpush1.msra.mxu0 0.0
        %497 = vmatprep.subr.mxu0 0.0
        %498 = vmatpush1.msra.mxu0 0.0
        %499 = vmatprep.subr.mxu0 0.0
        %500 = vmatpush1.msra.mxu0 0.0
        %501 = vmatprep.subr.mxu0 0.0
        %502 = vmatpush1.msra.mxu0 0.0
        %503 = vmatprep.subr.mxu0 0.0
        %504 = vmatpush1.msra.mxu0 0.0
        %505 = vmatprep.subr.mxu0 0.0
        %506 = vmatpush1.msra.mxu0 0.0
        %507 = vmatprep.mubr.f32.mxu0 0.0
        %508 = vmatmul.mubr.f32.gmra.mrb[0].mxu0 %v392
        %v509 = vpop.f32.mrb[0].mxu0
        %v510 = vadd.f32 %v388, %v509
        %v511 = vpop.f32.mrb[0].mxu0
        %512 = vmatprep.mubr.f32.mxu0 0.0
        %513 = vmatmul.mubr.f32.gmra.mrb[0].mxu0 %v395
        %v514 = vpop.f32.mrb[0].mxu0
        %v515 = vadd.f32 %v388, %v514
        %v516 = vpop.f32.mrb[0].mxu0
        %517 = vmatprep.mubr.f32.mxu0 0.0
        %518 = vmatmul.mubr.f32.gmra.mrb[0].mxu0 %v398
        %v519 = vpop.f32.mrb[0].mxu0
        %v520 = vadd.f32 %v388, %v519
        %v521 = vpop.f32.mrb[0].mxu0
        %522 = vmatprep.mubr.f32.mxu0 0.0
        %523 = vmatmul.mubr.f32.gmra.mrb[0].mxu0 %v401
        %v524 = vpop.f32.mrb[0].mxu0
        %v525 = vadd.f32 %v388, %v524
        %v526 = vpop.f32.mrb[0].mxu0
        %527 = vmatprep.mubr.f32.mxu0 0.0
        %528 = vmatmul.mubr.f32.gmra.mrb[0].mxu0 %v404
        %v529 = vpop.f32.mrb[0].mxu0
        %v530 = vadd.f32 %v388, %v529
        %v531 = vpop.f32.mrb[0].mxu0
        %532 = vmatprep.mubr.f32.mxu0 0.0
        %533 = vmatmul.mubr.f32.gmra.mrb[0].mxu0 %v407
        %v534 = vpop.f32.mrb[0].mxu0
        %v535 = vadd.f32 %v388, %v534
        %v536 = vpop.f32.mrb[0].mxu0
        %537 = vmatprep.mubr.f32.mxu0 0.0
        %538 = vmatmul.mubr.f32.gmra.mrb[0].mxu0 %v410
        %v539 = vpop.f32.mrb[0].mxu0
        %v540 = vadd.f32 %v388, %v539
        %v541 = vpop.f32.mrb[0].mxu0
        %542 = vmatprep.mubr.f32.mxu0 0.0
        %543 = vmatmul.mubr.f32.gmra.mrb[0].mxu0 %v413
        %v544 = vpop.f32.mrb[0].mxu0
        %v545 = vadd.f32 %v388, %v544
        %v546 = vpop.f32.mrb[0].mxu0
        %547 = vmatprep.mubr.f32.mxu0 0.0
        %548 = vmatmul.mubr.f32.gmra.mrb[0].mxu0 %v416
        %v549 = vpop.f32.mrb[0].mxu0
        %v550 = vadd.f32 %v388, %v549
        %v551 = vpop.f32.mrb[0].mxu0
        %552 = vmatprep.mubr.f32.mxu0 0.0
        %553 = vmatmul.mubr.f32.gmra.mrb[0].mxu0 %v419
        %v554 = vpop.f32.mrb[0].mxu0
        %v555 = vadd.f32 %v388, %v554
        %v556 = vpop.f32.mrb[0].mxu0
        %557 = vmatprep.mubr.f32.mxu0 0.0
        %558 = vmatmul.mubr.f32.gmra.mrb[0].mxu0 %v422
        %v559 = vpop.f32.mrb[0].mxu0
        %v560 = vadd.f32 %v388, %v559
        %v561 = vpop.f32.mrb[0].mxu0
        %562 = vmatprep.mubr.f32.mxu0 0.0
        %563 = vmatmul.mubr.f32.gmra.mrb[0].mxu0 %v425
        %v564 = vpop.f32.mrb[0].mxu0
        %v565 = vadd.f32 %v388, %v564
        %v566 = vpop.f32.mrb[0].mxu0
        %567 = vmatprep.mubr.f32.mxu0 0.0
        %568 = vmatmul.mubr.f32.gmra.mrb[0].mxu0 %v428
        %v569 = vpop.f32.mrb[0].mxu0
        %v570 = vadd.f32 %v388, %v569
        %v571 = vpop.f32.mrb[0].mxu0
        %572 = vmatprep.mubr.f32.mxu0 0.0
        %573 = vmatmul.mubr.f32.gmra.mrb[0].mxu0 %v431
        %v574 = vpop.f32.mrb[0].mxu0
        %v575 = vadd.f32 %v388, %v574
        %v576 = vpop.f32.mrb[0].mxu0
        %577 = vmatprep.mubr.f32.mxu0 0.0
        %578 = vmatmul.mubr.f32.gmra.mrb[0].mxu0 %v434
        %v579 = vpop.f32.mrb[0].mxu0
        %v580 = vadd.f32 %v388, %v579
        %v581 = vpop.f32.mrb[0].mxu0
        %582 = vmatprep.mubr.f32.mxu0 0.0
        %583 = vmatmul.mubr.f32.gmra.mrb[0].mxu0 %v437
        %v584 = vpop.f32.mrb[0].mxu0
        %v585 = vadd.f32 %v388, %v584
        %v586 = vpop.f32.mrb[0].mxu0
        %587 = vdwg.mxu0
        %v588 = vmax.f32 %v510, 0.0
        %v589 = vmax.f32 %v515, 0.0
        %v590 = vmax.f32 %v520, 0.0
        %v591 = vmax.f32 %v525, 0.0
        %v592 = vmax.f32 %v530, 0.0
        %v593 = vmax.f32 %v535, 0.0
        %v594 = vmax.f32 %v540, 0.0
        %v595 = vmax.f32 %v545, 0.0
        %v596 = vmax.f32 %v550, 0.0
        %v597 = vmax.f32 %v555, 0.0
        %v598 = vmax.f32 %v560, 0.0
        %v599 = vmax.f32 %v565, 0.0
        %v600 = vmax.f32 %v570, 0.0
        %v601 = vmax.f32 %v575, 0.0
        %v602 = vmax.f32 %v580, 0.0
        %v603 = vmax.f32 %v585, 0.0
        %v604 = vld [vmem:[%s4] sm:$0xff]
        %v605 = vld [vmem:[%s4 + $0x8] sm:$0xff]
        %v606 = vld [vmem:[%s4 + $0x10] sm:$0xff]
        %v607 = vld [vmem:[%s4 + $0x18] sm:$0xff]
        %v608 = vld [vmem:[%s4 + $0x20] sm:$0xff]
        %v609 = vld [vmem:[%s4 + $0x28] sm:$0xff]
        %v610 = vld [vmem:[%s4 + $0x30] sm:$0xff]
        %v611 = vld [vmem:[%s4 + $0x38] sm:$0xff]
        %v612 = vld [vmem:[%s4 + $0x40] sm:$0xff]
        %v613 = vld [vmem:[%s4 + $0x48] sm:$0xff]
        %v614 = vld [vmem:[%s4 + $0x50] sm:$0xff]
        %v615 = vld [vmem:[%s4 + $0x58] sm:$0xff]
        %v616 = vld [vmem:[%s4 + $0x60] sm:$0xff]
        %v617 = vld [vmem:[%s4 + $0x68] sm:$0xff]
        %v618 = vld [vmem:[%s4 + $0x70] sm:$0xff]
        %v619 = vld [vmem:[%s4 + $0x78] sm:$0xff]
        %v620 = vld [vmem:[%s5] sm:$0x1]
        %v622 = vlaneseq
        %v623 = vshrl.u32 %v622, 7
        %v624 = vsub.s32 0, %v623
        %v625 = vrot.slane %v620, %v624
        %627 = vmatprep.subr.mxu0 0.0
        %628 = vmatpush1.msra.mxu0 %v604
        %629 = vmatprep.subr.mxu0 0.0
        %630 = vmatpush1.msra.mxu0 %v605
        %631 = vmatprep.subr.mxu0 0.0
        %632 = vmatpush1.msra.mxu0 %v606
        %633 = vmatprep.subr.mxu0 0.0
        %634 = vmatpush1.msra.mxu0 %v607
        %635 = vmatprep.subr.mxu0 0.0
        %636 = vmatpush1.msra.mxu0 %v608
        %637 = vmatprep.subr.mxu0 0.0
        %638 = vmatpush1.msra.mxu0 %v609
        %639 = vmatprep.subr.mxu0 0.0
        %640 = vmatpush1.msra.mxu0 %v610
        %641 = vmatprep.subr.mxu0 0.0
        %642 = vmatpush1.msra.mxu0 %v611
        %643 = vmatprep.subr.mxu0 0.0
        %644 = vmatpush1.msra.mxu0 %v612
        %645 = vmatprep.subr.mxu0 0.0
        %646 = vmatpush1.msra.mxu0 %v613
        %647 = vmatprep.subr.mxu0 0.0
        %648 = vmatpush1.msra.mxu0 %v614
        %649 = vmatprep.subr.mxu0 0.0
        %650 = vmatpush1.msra.mxu0 %v615
        %651 = vmatprep.subr.mxu0 0.0
        %652 = vmatpush1.msra.mxu0 %v616
        %653 = vmatprep.subr.mxu0 0.0
        %654 = vmatpush1.msra.mxu0 %v617
        %655 = vmatprep.subr.mxu0 0.0
        %656 = vmatpush1.msra.mxu0 %v618
        %657 = vmatprep.subr.mxu0 0.0
        %658 = vmatpush1.msra.mxu0 %v619
        %659 = vmatprep.subr.mxu0 0.0
        %660 = vmatpush1.msra.mxu0 0.0
        %661 = vmatprep.subr.mxu0 0.0
        %662 = vmatpush1.msra.mxu0 0.0
        %663 = vmatprep.subr.mxu0 0.0
        %664 = vmatpush1.msra.mxu0 0.0
        %665 = vmatprep.subr.mxu0 0.0
        %666 = vmatpush1.msra.mxu0 0.0
        %667 = vmatprep.subr.mxu0 0.0
        %668 = vmatpush1.msra.mxu0 0.0
        %669 = vmatprep.subr.mxu0 0.0
        %670 = vmatpush1.msra.mxu0 0.0
        %671 = vmatprep.subr.mxu0 0.0
        %672 = vmatpush1.msra.mxu0 0.0
        %673 = vmatprep.subr.mxu0 0.0
        %674 = vmatpush1.msra.mxu0 0.0
        %675 = vmatprep.subr.mxu0 0.0
        %676 = vmatpush1.msra.mxu0 0.0
        %677 = vmatprep.subr.mxu0 0.0
        %678 = vmatpush1.msra.mxu0 0.0
        %679 = vmatprep.subr.mxu0 0.0
        %680 = vmatpush1.msra.mxu0 0.0
        %681 = vmatprep.subr.mxu0 0.0
        %682 = vmatpush1.msra.mxu0 0.0
        %683 = vmatprep.subr.mxu0 0.0
        %684 = vmatpush1.msra.mxu0 0.0
        %685 = vmatprep.subr.mxu0 0.0
        %686 = vmatpush1.msra.mxu0 0.0
        %687 = vmatprep.subr.mxu0 0.0
        %688 = vmatpush1.msra.mxu0 0.0
        %689 = vmatprep.subr.mxu0 0.0
        %690 = vmatpush1.msra.mxu0 0.0
        %691 = vmatprep.mubr.f32.mxu0 0.0
        %692 = vmatmul.mubr.f32.gmra.mrb[0].mxu0 %v588
        %v693 = vpop.f32.mrb[0].mxu0
        %v694 = vadd.f32 %v625, %v693
        %v695 = vpop.f32.mrb[0].mxu0
        %696 = vmatprep.mubr.f32.mxu0 0.0
        %697 = vmatmul.mubr.f32.gmra.mrb[0].mxu0 %v589
        %v698 = vpop.f32.mrb[0].mxu0
        %v699 = vadd.f32 %v625, %v698
        %v700 = vpop.f32.mrb[0].mxu0
        %701 = vmatprep.mubr.f32.mxu0 0.0
        %702 = vmatmul.mubr.f32.gmra.mrb[0].mxu0 %v590
        %v703 = vpop.f32.mrb[0].mxu0
        %v704 = vadd.f32 %v625, %v703
        %v705 = vpop.f32.mrb[0].mxu0
        %706 = vmatprep.mubr.f32.mxu0 0.0
        %707 = vmatmul.mubr.f32.gmra.mrb[0].mxu0 %v591
        %v708 = vpop.f32.mrb[0].mxu0
        %v709 = vadd.f32 %v625, %v708
        %v710 = vpop.f32.mrb[0].mxu0
        %711 = vmatprep.mubr.f32.mxu0 0.0
        %712 = vmatmul.mubr.f32.gmra.mrb[0].mxu0 %v592
        %v713 = vpop.f32.mrb[0].mxu0
        %v714 = vadd.f32 %v625, %v713
        %v715 = vpop.f32.mrb[0].mxu0
        %716 = vmatprep.mubr.f32.mxu0 0.0
        %717 = vmatmul.mubr.f32.gmra.mrb[0].mxu0 %v593
        %v718 = vpop.f32.mrb[0].mxu0
        %v719 = vadd.f32 %v625, %v718
        %v720 = vpop.f32.mrb[0].mxu0
        %721 = vmatprep.mubr.f32.mxu0 0.0
        %722 = vmatmul.mubr.f32.gmra.mrb[0].mxu0 %v594
        %v723 = vpop.f32.mrb[0].mxu0
        %v724 = vadd.f32 %v625, %v723
        %v725 = vpop.f32.mrb[0].mxu0
        %726 = vmatprep.mubr.f32.mxu0 0.0
        %727 = vmatmul.mubr.f32.gmra.mrb[0].mxu0 %v595
        %v728 = vpop.f32.mrb[0].mxu0
        %v729 = vadd.f32 %v625, %v728
        %v730 = vpop.f32.mrb[0].mxu0
        %731 = vmatprep.mubr.f32.mxu0 0.0
        %732 = vmatmul.mubr.f32.gmra.mrb[0].mxu0 %v596
        %v733 = vpop.f32.mrb[0].mxu0
        %v734 = vadd.f32 %v625, %v733
        %v735 = vpop.f32.mrb[0].mxu0
        %736 = vmatprep.mubr.f32.mxu0 0.0
        %737 = vmatmul.mubr.f32.gmra.mrb[0].mxu0 %v597
        %v738 = vpop.f32.mrb[0].mxu0
        %v739 = vadd.f32 %v625, %v738
        %v740 = vpop.f32.mrb[0].mxu0
        %741 = vmatprep.mubr.f32.mxu0 0.0
        %742 = vmatmul.mubr.f32.gmra.mrb[0].mxu0 %v598
        %v743 = vpop.f32.mrb[0].mxu0
        %v744 = vadd.f32 %v625, %v743
        %v745 = vpop.f32.mrb[0].mxu0
        %746 = vmatprep.mubr.f32.mxu0 0.0
        %747 = vmatmul.mubr.f32.gmra.mrb[0].mxu0 %v599
        %v748 = vpop.f32.mrb[0].mxu0
        %v749 = vadd.f32 %v625, %v748
        %v750 = vpop.f32.mrb[0].mxu0
        %751 = vmatprep.mubr.f32.mxu0 0.0
        %752 = vmatmul.mubr.f32.gmra.mrb[0].mxu0 %v600
        %v753 = vpop.f32.mrb[0].mxu0
        %v754 = vadd.f32 %v625, %v753
        %v755 = vpop.f32.mrb[0].mxu0
        %756 = vmatprep.mubr.f32.mxu0 0.0
        %757 = vmatmul.mubr.f32.gmra.mrb[0].mxu0 %v601
        %v758 = vpop.f32.mrb[0].mxu0
        %v759 = vadd.f32 %v625, %v758
        %v760 = vpop.f32.mrb[0].mxu0
        %761 = vmatprep.mubr.f32.mxu0 0.0
        %762 = vmatmul.mubr.f32.gmra.mrb[0].mxu0 %v602
        %v763 = vpop.f32.mrb[0].mxu0
        %v764 = vadd.f32 %v625, %v763
        %v765 = vpop.f32.mrb[0].mxu0
        %766 = vmatprep.mubr.f32.mxu0 0.0
        %767 = vmatmul.mubr.f32.gmra.mrb[0].mxu0 %v603
        %v768 = vpop.f32.mrb[0].mxu0
        %v769 = vadd.f32 %v625, %v768
        %v770 = vpop.f32.mrb[0].mxu0
        %771 = vdwg.mxu0
        %v772 = vmax.f32 %v694, 0.0
        %v773 = vmax.f32 %v699, 0.0
        %v774 = vmax.f32 %v704, 0.0
        %v775 = vmax.f32 %v709, 0.0
        %v776 = vmax.f32 %v714, 0.0
        %v777 = vmax.f32 %v719, 0.0
        %v778 = vmax.f32 %v724, 0.0
        %v779 = vmax.f32 %v729, 0.0
        %v780 = vmax.f32 %v734, 0.0
        %v781 = vmax.f32 %v739, 0.0
        %v782 = vmax.f32 %v744, 0.0
        %v783 = vmax.f32 %v749, 0.0
        %v784 = vmax.f32 %v754, 0.0
        %v785 = vmax.f32 %v759, 0.0
        %v786 = vmax.f32 %v764, 0.0
        %v787 = vmax.f32 %v769, 0.0
        %v788 = vld [vmem:[%s360] sm:$0x1]
        %v789 = vlaneseq
        %v790 = vshrl.u32 %v789, 7
        %v791 = vlaneseq
        %v792 = vshrl.u32 %v791, 7
        %v793 = vsub.s32 0, %v792
        %v794 = vrot.slane %v788, %v793
        %vm795 = vcmp.eq.s32.totalorder %v790, %v794
        %796 = vxpose.xlu0.b32.start [1/16] %v772, 128
        %797 = vxpose.xlu0.b32.cont [2/16] %v773, 128
        %798 = vxpose.xlu0.b32.cont [3/16] %v774, 128
        %799 = vxpose.xlu0.b32.cont [4/16] %v775, 128
        %800 = vxpose.xlu0.b32.cont [5/16] %v776, 128
        %801 = vxpose.xlu0.b32.cont [6/16] %v777, 128
        %802 = vxpose.xlu0.b32.cont [7/16] %v778, 128
        %803 = vxpose.xlu0.b32.cont [8/16] %v779, 128
        %804 = vxpose.xlu0.b32.cont [9/16] %v780, 128
        %805 = vxpose.xlu0.b32.cont [10/16] %v781, 128
        %806 = vxpose.xlu0.b32.cont [11/16] %v782, 128
        %807 = vxpose.xlu0.b32.cont [12/16] %v783, 128
        %808 = vxpose.xlu0.b32.cont [13/16] %v784, 128
        %809 = vxpose.xlu0.b32.cont [14/16] %v785, 128
        %810 = vxpose.xlu0.b32.cont [15/16] %v786, 128
        %811 = vxpose.xlu0.b32.end [16/16] %v787, 128
        %v812 = vpop.trf.xlu0
        %v813 = vpop.trf.xlu0
        %v814 = vpop.trf.xlu0
        %v815 = vpop.trf.xlu0
        %v816 = vpop.trf.xlu0
        %v817 = vpop.trf.xlu0
        %v818 = vpop.trf.xlu0
        %v819 = vpop.trf.xlu0
        %v820 = vpop.trf.xlu0
        %v821 = vpop.trf.xlu0
        %v822 = vpop.trf.xlu0
        %v823 = vpop.trf.xlu0
        %v824 = vpop.trf.xlu0
        %v825 = vpop.trf.xlu0
        %v826 = vpop.trf.xlu0
        %v827 = vpop.trf.xlu0
        %v828 = vsel %vm795, 1, 0
        %v829 = vcombine.high %v828, %v828
        %v831 = vunpack.c.l.s4 1966171168
        %v832 = vunpack.c.0.s8 %v831
        %v833 = vlaneseq
        %v834 = vshrl.u32 %v833, 7
        %v835 = vsub.s32 %v832, %v834
        %v836 = vrot.slane %v828, %v835
        %v838 = vunpack.c.l.s4 1966171168
        %v839 = vunpack.c.0.s8 %v838
        %v840 = vlaneseq
        %v841 = vshrl.u32 %v840, 7
        %v842 = vsub.s32 %v839, %v841
        %v843 = vrot.slane %v829, %v842
        %v844 = vcombine.high %v836, %v836
        %v845 = vcombine.high %v843, %v843
        %v847 = vunpack.c.l.s4 1966171168
        %v848 = vunpack.c.0.s8 %v847
        %v849 = vlaneseq
        %v850 = vshrl.u32 %v849, 7
        %v851 = vsub.s32 %v848, %v850
        %v852 = vrot.slane %v836, %v851
        %v854 = vunpack.c.l.s4 1966171168
        %v855 = vunpack.c.0.s8 %v854
        %v856 = vlaneseq
        %v857 = vshrl.u32 %v856, 7
        %v858 = vsub.s32 %v855, %v857
        %v859 = vrot.slane %v843, %v858
        %v861 = vunpack.c.l.s4 1966171168
        %v862 = vunpack.c.0.s8 %v861
        %v863 = vlaneseq
        %v864 = vshrl.u32 %v863, 7
        %v865 = vsub.s32 %v862, %v864
        %v866 = vrot.slane %v844, %v865
        %v868 = vunpack.c.l.s4 1966171168
        %v869 = vunpack.c.0.s8 %v868
        %v870 = vlaneseq
        %v871 = vshrl.u32 %v870, 7
        %v872 = vsub.s32 %v869, %v871
        %v873 = vrot.slane %v845, %v872
        %v874 = vcombine.high %v852, %v852
        %v875 = vcombine.high %v859, %v859
        %v876 = vcombine.high %v866, %v866
        %v877 = vcombine.high %v873, %v873
        %vm878 = vcmp.ne.s32.totalorder %v852, 0
        %vm879 = vcmp.ne.s32.totalorder %v866, 0
        %vm880 = vcmp.ne.s32.totalorder %v874, 0
        %vm881 = vcmp.ne.s32.totalorder %v876, 0
        %vm882 = vcmp.ne.s32.totalorder %v859, 0
        %vm883 = vcmp.ne.s32.totalorder %v873, 0
        %vm884 = vcmp.ne.s32.totalorder %v875, 0
        %vm885 = vcmp.ne.s32.totalorder %v877, 0
        %v886 = vsel %vm878, 1, 0
        %v887 = vsel %vm879, 1, 0
        %v888 = vsel %vm880, 1, 0
        %v889 = vsel %vm881, 1, 0
        %v890 = vsel %vm882, 1, 0
        %v891 = vsel %vm883, 1, 0
        %v892 = vsel %vm884, 1, 0
        %v893 = vsel %vm885, 1, 0
        %v894 = vlaneseq
        %v895 = vshrl.u32 %v894, 7
        %v896 = vsub.s32 0, %v895
        %v897 = vrot.slane %v886, %v896
        %v898 = vlaneseq
        %v899 = vshrl.u32 %v898, 7
        %v900 = vsub.s32 0, %v899
        %v901 = vrot.slane %v887, %v900
        %v902 = vlaneseq
        %v903 = vshrl.u32 %v902, 7
        %v904 = vsub.s32 0, %v903
        %v905 = vrot.slane %v888, %v904
        %v906 = vlaneseq
        %v907 = vshrl.u32 %v906, 7
        %v908 = vsub.s32 0, %v907
        %v909 = vrot.slane %v889, %v908
        %v910 = vlaneseq
        %v911 = vshrl.u32 %v910, 7
        %v912 = vsub.s32 0, %v911
        %v913 = vrot.slane %v890, %v912
        %v914 = vlaneseq
        %v915 = vshrl.u32 %v914, 7
        %v916 = vsub.s32 0, %v915
        %v917 = vrot.slane %v891, %v916
        %v918 = vlaneseq
        %v919 = vshrl.u32 %v918, 7
        %v920 = vsub.s32 0, %v919
        %v921 = vrot.slane %v892, %v920
        %v922 = vlaneseq
        %v923 = vshrl.u32 %v922, 7
        %v924 = vsub.s32 0, %v923
        %v925 = vrot.slane %v893, %v924
        %vm926 = vcmp.eq.s32.totalorder %v897, 1
        %vm927 = vcmp.eq.s32.totalorder %v901, 1
        %vm928 = vcmp.eq.s32.totalorder %v905, 1
        %vm929 = vcmp.eq.s32.totalorder %v909, 1
        %vm930 = vcmp.eq.s32.totalorder %v913, 1
        %vm931 = vcmp.eq.s32.totalorder %v917, 1
        %vm932 = vcmp.eq.s32.totalorder %v921, 1
        %vm933 = vcmp.eq.s32.totalorder %v925, 1
        %v934 = vsel %vm926, %v812, -inf
        %v935 = vsel %vm926, %v813, -inf
        %v936 = vsel %vm927, %v812, -inf
        %v937 = vsel %vm927, %v813, -inf
        %v938 = vsel %vm928, %v812, -inf
        %v939 = vsel %vm928, %v813, -inf
        %v940 = vsel %vm929, %v812, -inf
        %v941 = vsel %vm929, %v813, -inf
        %v942 = vsel %vm930, %v812, -inf
        %v943 = vsel %vm930, %v813, -inf
        %v944 = vsel %vm931, %v812, -inf
        %v945 = vsel %vm931, %v813, -inf
        %v946 = vsel %vm932, %v812, -inf
        %v947 = vsel %vm932, %v813, -inf
        %v948 = vsel %vm933, %v812, -inf
        %v949 = vsel %vm933, %v813, -inf
        %950 = vmax.xlane.f32.xlu0 %v934
        %v951 = vpop.xlane.xlu0 %950
        %952 = vmax.xlane.f32.xlu0 %v935
        %v953 = vpop.xlane.xlu0 %952
        %954 = vmax.xlane.f32.xlu0 %v936
        %v955 = vpop.xlane.xlu0 %954
        %956 = vmax.xlane.f32.xlu0 %v937
        %v957 = vpop.xlane.xlu0 %956
        %958 = vmax.xlane.f32.xlu0 %v938
        %v959 = vpop.xlane.xlu0 %958
        %960 = vmax.xlane.f32.xlu0 %v939
        %v961 = vpop.xlane.xlu0 %960
        %962 = vmax.xlane.f32.xlu0 %v940
        %v963 = vpop.xlane.xlu0 %962
        %964 = vmax.xlane.f32.xlu0 %v941
        %v965 = vpop.xlane.xlu0 %964
        %966 = vmax.xlane.f32.xlu0 %v942
        %v967 = vpop.xlane.xlu0 %966
        %968 = vmax.xlane.f32.xlu0 %v943
        %v969 = vpop.xlane.xlu0 %968
        %970 = vmax.xlane.f32.xlu0 %v944
        %v971 = vpop.xlane.xlu0 %970
        %972 = vmax.xlane.f32.xlu0 %v945
        %v973 = vpop.xlane.xlu0 %972
        %974 = vmax.xlane.f32.xlu0 %v946
        %v975 = vpop.xlane.xlu0 %974
        %976 = vmax.xlane.f32.xlu0 %v947
        %v977 = vpop.xlane.xlu0 %976
        %978 = vmax.xlane.f32.xlu0 %v948
        %v979 = vpop.xlane.xlu0 %978
        %980 = vmax.xlane.f32.xlu0 %v949
        %v981 = vpop.xlane.xlu0 %980
        %v982 = vld [vmem:[#allocation2] sm:$0xff]
        %v999 = vlaneseq
        %v1000 = vand.u32 %v999, 127
        %v1001 = vlaneseq
        %v1002 = vshrl.u32 %v1001, 7
        %v1003 = vsub.s32 %v1000, %v1002
        %v1004 = vrot.slane %v951, %v1003
        %v1005 = vadd.s32 %v1000, 4294967288
        %v1006 = vlaneseq
        %v1007 = vshrl.u32 %v1006, 7
        %v1008 = vsub.s32 %v1005, %v1007
        %v1009 = vrot.slane %v953, %v1008
        %vm1010 = vcmask 130112
        %v1011 = vsel %vm1010, %v1009, %v1004
        %v1012 = vlaneseq
        %v1013 = vshrl.u32 %v1012, 7
        %v1014 = vsub.s32 %v1000, %v1013
        %v1015 = vrot.slane %v955, %v1014
        %v1016 = vlaneseq
        %v1017 = vshrl.u32 %v1016, 7
        %v1018 = vsub.s32 %v1005, %v1017
        %v1019 = vrot.slane %v957, %v1018
        %v1020 = vsel %vm1010, %v1019, %v1015
        %v1021 = vlaneseq
        %v1022 = vshrl.u32 %v1021, 7
        %v1023 = vsub.s32 %v1000, %v1022
        %v1024 = vrot.slane %v959, %v1023
        %v1025 = vlaneseq
        %v1026 = vshrl.u32 %v1025, 7
        %v1027 = vsub.s32 %v1005, %v1026
        %v1028 = vrot.slane %v961, %v1027
        %v1029 = vsel %vm1010, %v1028, %v1024
        %v1030 = vlaneseq
        %v1031 = vshrl.u32 %v1030, 7
        %v1032 = vsub.s32 %v1000, %v1031
        %v1033 = vrot.slane %v963, %v1032
        %v1034 = vlaneseq
        %v1035 = vshrl.u32 %v1034, 7
        %v1036 = vsub.s32 %v1005, %v1035
        %v1037 = vrot.slane %v965, %v1036
        %v1038 = vsel %vm1010, %v1037, %v1033
        %v1039 = vlaneseq
        %v1040 = vshrl.u32 %v1039, 7
        %v1041 = vsub.s32 %v1000, %v1040
        %v1042 = vrot.slane %v967, %v1041
        %v1043 = vlaneseq
        %v1044 = vshrl.u32 %v1043, 7
        %v1045 = vsub.s32 %v1005, %v1044
        %v1046 = vrot.slane %v969, %v1045
        %v1047 = vsel %vm1010, %v1046, %v1042
        %v1048 = vlaneseq
        %v1049 = vshrl.u32 %v1048, 7
        %v1050 = vsub.s32 %v1000, %v1049
        %v1051 = vrot.slane %v971, %v1050
        %v1052 = vlaneseq
        %v1053 = vshrl.u32 %v1052, 7
        %v1054 = vsub.s32 %v1005, %v1053
        %v1055 = vrot.slane %v973, %v1054
        %v1056 = vsel %vm1010, %v1055, %v1051
        %v1057 = vlaneseq
        %v1058 = vshrl.u32 %v1057, 7
        %v1059 = vsub.s32 %v1000, %v1058
        %v1060 = vrot.slane %v975, %v1059
        %v1061 = vlaneseq
        %v1062 = vshrl.u32 %v1061, 7
        %v1063 = vsub.s32 %v1005, %v1062
        %v1064 = vrot.slane %v977, %v1063
        %v1065 = vsel %vm1010, %v1064, %v1060
        %v1066 = vlaneseq
        %v1067 = vshrl.u32 %v1066, 7
        %v1068 = vsub.s32 %v1000, %v1067
        %v1069 = vrot.slane %v979, %v1068
        %v1070 = vlaneseq
        %v1071 = vshrl.u32 %v1070, 7
        %v1072 = vsub.s32 %v1005, %v1071
        %v1073 = vrot.slane %v981, %v1072
        %v1074 = vsel %vm1010, %v1073, %v1069
        %vm1075 = vcmask 1041409
        %v1076 = vsel %vm1075, %v1020, %v1011
        %vm1077 = vcmask 1042434
        %v1078 = vsel %vm1077, %v1029, %v1076
        %vm1079 = vcmask 1043459
        %v1080 = vsel %vm1079, %v1038, %v1078
        %vm1081 = vcmask 1044484
        %v1082 = vsel %vm1081, %v1047, %v1080
        %vm1083 = vcmask 1045509
        %v1084 = vsel %vm1083, %v1056, %v1082
        %vm1085 = vcmask 1046534
        %v1086 = vsel %vm1085, %v1065, %v1084
        %vm1087 = vcmask 1047559
        %v1088 = vsel %vm1087, %v1074, %v1086
        %v1090 = vmax.f32 %v982, %v1088
        %vm1091 = vcmask 130048
        %1092 = vst.msk [vmem:[#allocation2] sm:$0xff] %vm1091, %v1090
        %p1093 = scmp.eq.s32.totalorder %s24, 2
        // Predicated region
        $region61: #{tpu_custom_call.1} parent=55 // pred_check
          %p1094 = pneg %p1093
        $region62: #{tpu_custom_call.1} parent=55 // pred_check_branch
          %1096 = sbr.rel (%p1094) target = $region64
        $region63: #{tpu_custom_call.1} parent=55 // pred_region
          %v1097 = vld [vmem:[#allocation2] sm:$0xff]
          %vm1098 = vcmp.gt.f32.partialorder %v1097, -inf
          %v1099 = vsel %vm1098, %v1097, 0.0
          %v1100 = vld [vmem:[%s6] sm:$0xff]
          %v1101 = vld [vmem:[%s6 + $0x8] sm:$0xff]
          %v1102 = vld [vmem:[%s6 + $0x10] sm:$0xff]
          %v1103 = vld [vmem:[%s6 + $0x18] sm:$0xff]
          %v1104 = vld [vmem:[%s6 + $0x20] sm:$0xff]
          %v1105 = vld [vmem:[%s6 + $0x28] sm:$0xff]
          %v1106 = vld [vmem:[%s6 + $0x30] sm:$0xff]
          %v1107 = vld [vmem:[%s6 + $0x38] sm:$0xff]
          %v1108 = vld [vmem:[%s6 + $0x40] sm:$0xff]
          %v1109 = vld [vmem:[%s6 + $0x48] sm:$0xff]
          %v1110 = vld [vmem:[%s6 + $0x50] sm:$0xff]
          %v1111 = vld [vmem:[%s6 + $0x58] sm:$0xff]
          %v1112 = vld [vmem:[%s6 + $0x60] sm:$0xff]
          %v1113 = vld [vmem:[%s6 + $0x68] sm:$0xff]
          %v1114 = vld [vmem:[%s6 + $0x70] sm:$0xff]
          %v1115 = vld [vmem:[%s6 + $0x78] sm:$0xff]
          %v1116 = vld [vmem:[%s7] sm:$0x1]
          %v1118 = vlaneseq
          %v1119 = vshrl.u32 %v1118, 7
          %v1120 = vsub.s32 0, %v1119
          %v1121 = vrot.slane %v1116, %v1120
          %1123 = vmatprep.subr.mxu0 0.0
          %1124 = vmatpush1.msra.mxu0 %v1100
          %1125 = vmatprep.subr.mxu0 0.0
          %1126 = vmatpush1.msra.mxu0 %v1101
          %1127 = vmatprep.subr.mxu0 0.0
          %1128 = vmatpush1.msra.mxu0 %v1102
          %1129 = vmatprep.subr.mxu0 0.0
          %1130 = vmatpush1.msra.mxu0 %v1103
          %1131 = vmatprep.subr.mxu0 0.0
          %1132 = vmatpush1.msra.mxu0 %v1104
          %1133 = vmatprep.subr.mxu0 0.0
          %1134 = vmatpush1.msra.mxu0 %v1105
          %1135 = vmatprep.subr.mxu0 0.0
          %1136 = vmatpush1.msra.mxu0 %v1106
          %1137 = vmatprep.subr.mxu0 0.0
          %1138 = vmatpush1.msra.mxu0 %v1107
          %1139 = vmatprep.subr.mxu0 0.0
          %1140 = vmatpush1.msra.mxu0 %v1108
          %1141 = vmatprep.subr.mxu0 0.0
          %1142 = vmatpush1.msra.mxu0 %v1109
          %1143 = vmatprep.subr.mxu0 0.0
          %1144 = vmatpush1.msra.mxu0 %v1110
          %1145 = vmatprep.subr.mxu0 0.0
          %1146 = vmatpush1.msra.mxu0 %v1111
          %1147 = vmatprep.subr.mxu0 0.0
          %1148 = vmatpush1.msra.mxu0 %v1112
          %1149 = vmatprep.subr.mxu0 0.0
          %1150 = vmatpush1.msra.mxu0 %v1113
          %1151 = vmatprep.subr.mxu0 0.0
          %1152 = vmatpush1.msra.mxu0 %v1114
          %1153 = vmatprep.subr.mxu0 0.0
          %1154 = vmatpush1.msra.mxu0 %v1115
          %1155 = vmatprep.subr.mxu0 0.0
          %1156 = vmatpush1.msra.mxu0 0.0
          %1157 = vmatprep.subr.mxu0 0.0
          %1158 = vmatpush1.msra.mxu0 0.0
          %1159 = vmatprep.subr.mxu0 0.0
          %1160 = vmatpush1.msra.mxu0 0.0
          %1161 = vmatprep.subr.mxu0 0.0
          %1162 = vmatpush1.msra.mxu0 0.0
          %1163 = vmatprep.subr.mxu0 0.0
          %1164 = vmatpush1.msra.mxu0 0.0
          %1165 = vmatprep.subr.mxu0 0.0
          %1166 = vmatpush1.msra.mxu0 0.0
          %1167 = vmatprep.subr.mxu0 0.0
          %1168 = vmatpush1.msra.mxu0 0.0
          %1169 = vmatprep.subr.mxu0 0.0
          %1170 = vmatpush1.msra.mxu0 0.0
          %1171 = vmatprep.subr.mxu0 0.0
          %1172 = vmatpush1.msra.mxu0 0.0
          %1173 = vmatprep.subr.mxu0 0.0
          %1174 = vmatpush1.msra.mxu0 0.0
          %1175 = vmatprep.subr.mxu0 0.0
          %1176 = vmatpush1.msra.mxu0 0.0
          %1177 = vmatprep.subr.mxu0 0.0
          %1178 = vmatpush1.msra.mxu0 0.0
          %1179 = vmatprep.subr.mxu0 0.0
          %1180 = vmatpush1.msra.mxu0 0.0
          %1181 = vmatprep.subr.mxu0 0.0
          %1182 = vmatpush1.msra.mxu0 0.0
          %1183 = vmatprep.subr.mxu0 0.0
          %1184 = vmatpush1.msra.mxu0 0.0
          %1185 = vmatprep.subr.mxu0 0.0
          %1186 = vmatpush1.msra.mxu0 0.0
          %1187 = vmatprep.mubr.f32.mxu0 0.0
          %1188 = vmatmul.mubr.f32.gmra.mrb[0].mxu0 %v1099
          %v1189 = vpop.f32.mrb[0].mxu0
          %v1190 = vadd.f32 %v1121, %v1189
          %v1191 = vpop.f32.mrb[0].mxu0
          %1192 = vdwg.mxu0
          %v1193 = vmax.f32 %v1190, 0.0
          %1194 = vst [vmem:[#allocation3] sm:$0xff] %v1193
          %v1195 = vld [vmem:[%s8] sm:$0xff]
          %v1196 = vld [vmem:[%s8 + $0x8] sm:$0xff]
          %v1197 = vld [vmem:[%s8 + $0x10] sm:$0xff]
          %v1198 = vld [vmem:[%s8 + $0x18] sm:$0xff]
          %v1199 = vld [vmem:[%s8 + $0x20] sm:$0xff]
          %v1200 = vld [vmem:[%s8 + $0x28] sm:$0xff]
          %v1201 = vld [vmem:[%s8 + $0x30] sm:$0xff]
          %v1202 = vld [vmem:[%s8 + $0x38] sm:$0xff]
          %v1203 = vld [vmem:[%s8 + $0x40] sm:$0xff]
          %v1204 = vld [vmem:[%s8 + $0x48] sm:$0xff]
          %v1205 = vld [vmem:[%s8 + $0x50] sm:$0xff]
          %v1206 = vld [vmem:[%s8 + $0x58] sm:$0xff]
          %v1207 = vld [vmem:[%s8 + $0x60] sm:$0xff]
          %v1208 = vld [vmem:[%s8 + $0x68] sm:$0xff]
          %v1209 = vld [vmem:[%s8 + $0x70] sm:$0xff]
          %v1210 = vld [vmem:[%s8 + $0x78] sm:$0xff]
          %1211 = vmatprep.subr.mxu0 0.0
          %1212 = vmatpush1.msra.mxu0 %v1195
          %1213 = vmatprep.subr.mxu0 0.0
          %1214 = vmatpush1.msra.mxu0 %v1196
          %1215 = vmatprep.subr.mxu0 0.0
          %1216 = vmatpush1.msra.mxu0 %v1197
          %1217 = vmatprep.subr.mxu0 0.0
          %1218 = vmatpush1.msra.mxu0 %v1198
          %1219 = vmatprep.subr.mxu0 0.0
          %1220 = vmatpush1.msra.mxu0 %v1199
          %1221 = vmatprep.subr.mxu0 0.0
          %1222 = vmatpush1.msra.mxu0 %v1200
          %1223 = vmatprep.subr.mxu0 0.0
          %1224 = vmatpush1.msra.mxu0 %v1201
          %1225 = vmatprep.subr.mxu0 0.0
          %1226 = vmatpush1.msra.mxu0 %v1202
          %1227 = vmatprep.subr.mxu0 0.0
          %1228 = vmatpush1.msra.mxu0 %v1203
          %1229 = vmatprep.subr.mxu0 0.0
          %1230 = vmatpush1.msra.mxu0 %v1204
          %1231 = vmatprep.subr.mxu0 0.0
          %1232 = vmatpush1.msra.mxu0 %v1205
          %1233 = vmatprep.subr.mxu0 0.0
          %1234 = vmatpush1.msra.mxu0 %v1206
          %1235 = vmatprep.subr.mxu0 0.0
          %1236 = vmatpush1.msra.mxu0 %v1207
          %1237 = vmatprep.subr.mxu0 0.0
          %1238 = vmatpush1.msra.mxu0 %v1208
          %1239 = vmatprep.subr.mxu0 0.0
          %1240 = vmatpush1.msra.mxu0 %v1209
          %1241 = vmatprep.subr.mxu0 0.0
          %1242 = vmatpush1.msra.mxu0 %v1210
          %1243 = vmatprep.subr.mxu0 0.0
          %1244 = vmatpush1.msra.mxu0 0.0
          %1245 = vmatprep.subr.mxu0 0.0
          %1246 = vmatpush1.msra.mxu0 0.0
          %1247 = vmatprep.subr.mxu0 0.0
          %1248 = vmatpush1.msra.mxu0 0.0
          %1249 = vmatprep.subr.mxu0 0.0
          %1250 = vmatpush1.msra.mxu0 0.0
          %1251 = vmatprep.subr.mxu0 0.0
          %1252 = vmatpush1.msra.mxu0 0.0
          %1253 = vmatprep.subr.mxu0 0.0
          %1254 = vmatpush1.msra.mxu0 0.0
          %1255 = vmatprep.subr.mxu0 0.0
          %1256 = vmatpush1.msra.mxu0 0.0
          %1257 = vmatprep.subr.mxu0 0.0
          %1258 = vmatpush1.msra.mxu0 0.0
          %1259 = vmatprep.subr.mxu0 0.0
          %1260 = vmatpush1.msra.mxu0 0.0
          %1261 = vmatprep.subr.mxu0 0.0
          %1262 = vmatpush1.msra.mxu0 0.0
          %1263 = vmatprep.subr.mxu0 0.0
          %1264 = vmatpush1.msra.mxu0 0.0
          %1265 = vmatprep.subr.mxu0 0.0
          %1266 = vmatpush1.msra.mxu0 0.0
          %1267 = vmatprep.subr.mxu0 0.0
          %1268 = vmatpush1.msra.mxu0 0.0
          %1269 = vmatprep.subr.mxu0 0.0
          %1270 = vmatpush1.msra.mxu0 0.0
          %1271 = vmatprep.subr.mxu0 0.0
          %1272 = vmatpush1.msra.mxu0 0.0
          %1273 = vmatprep.subr.mxu0 0.0
          %1274 = vmatpush1.msra.mxu0 0.0
          %1275 = vmatprep.mubr.f32.mxu0 0.0
          %1276 = vmatmul.mubr.f32.gmra.mrb[0].mxu0 %v1193
          %v1277 = vpop.f32.mrb[0].mxu0
          %v1278 = vadd.f32 0.0, %v1277
          %v1279 = vpop.f32.mrb[0].mxu0
          %1280 = vdwg.mxu0
          %1281 = vst [vmem:[#allocation5] sm:$0xff] %v1278
        $region64: #{tpu_custom_call.1} parent=55 // pred_fallthru
          _
        // Predicated region
        $region65: #{tpu_custom_call.1} parent=55 // pred_check
          %p1282 = pneg %p236
        $region66: #{tpu_custom_call.1} parent=55 // pred_check_branch
          %1284 = sbr.rel (%p1282) target = $region68
        $region67: #{tpu_custom_call.1} parent=55 // pred_region
          %s1286 = ssub.s32 128, 128
          %1287 = vsyncadd [#allocation4], %s1286
          %s1289 = sshll.u32 [#allocation3], 4
          %s1290 = int_to_ptr.vmem [resolvable:$true] %s1289
          %1292 = dma.vmem_to_hbm [thread:$0]  %s1290, 128, %s9, [#allocation4]
        $region68: #{tpu_custom_call.1} parent=55 // pred_fallthru
          _
        // Predicated region
        $region69: #{tpu_custom_call.1} parent=55 // pred_check
          %p1293 = pneg %p257
        $region70: #{tpu_custom_call.1} parent=55 // pred_check_branch
          %1295 = sbr.rel (%p1293) target = $region72
        $region71: #{tpu_custom_call.1} parent=55 // pred_region
          %s1297 = ssub.s32 128, 128
          %1298 = vsyncadd [#allocation6], %s1297
          %s1300 = sshll.u32 [#allocation5], 4
          %s1301 = int_to_ptr.vmem [resolvable:$true] %s1300
          %1303 = dma.vmem_to_hbm [thread:$0]  %s1301, 128, %s10, [#allocation6]
        $region72: #{tpu_custom_call.1} parent=55 // pred_fallthru
          _
        // Predicated region
        $region73: #{tpu_custom_call.1} parent=55 // pred_check
          %p1304 = pneg %p236
        $region74: #{tpu_custom_call.1} parent=55 // pred_check_branch
          %1306 = sbr.rel (%p1304) target = $region76
        $region75: #{tpu_custom_call.1} parent=55 // pred_region
          %1307 = dma.done [#allocation4], 128
        $region76: #{tpu_custom_call.1} parent=55 // pred_fallthru
          _
        // Predicated region
        $region77: #{tpu_custom_call.1} parent=55 // pred_check
          %p1308 = pneg %p257
        $region78: #{tpu_custom_call.1} parent=55 // pred_check_branch
          %1310 = sbr.rel (%p1308) target = $region80
        $region79: #{tpu_custom_call.1} parent=55 // pred_region
          %1311 = dma.done [#allocation6], 128
        $region80: #{tpu_custom_call.1} parent=55 // pred_fallthru
          _
      $region56: #{tpu_custom_call.1} parent=5 // pred_fallthru
        _
      %p1312 = scmp.le.s32.totalorder 2, %s19
      // Predicated region
      $region81: #{tpu_custom_call.1} parent=5 // pred_check
        %p1313 = pneg %p1312
      $region82: #{tpu_custom_call.1} parent=5 // pred_check_branch
        %1315 = sbr.rel (%p1313) target = $region84
      $region83: #{tpu_custom_call.1} parent=5 // pred_region
        %s1316 = ssub.s32 %s19, 2
      $region84: #{tpu_custom_call.1} parent=5 // pred_fallthru
        _
    $region6: #{tpu_custom_call.1} parent=1 // loop_footer
      %s23 = sadd.s32 1, %s19
    $region7: #{tpu_custom_call.1} parent=1 // loop_footer_branch
      %18 = sbr.rel target = $region3
    $region8: #{tpu_custom_call.1} parent=1 // loop_exit
      _
    %1317 = vsyncpa [#allocation4], 1
    %s1318 = scalar_lea.sflag [#allocation4], 1
    %1319 = vsyncpa %s1318, 1
    %1320 = vsyncpa [#allocation6], 1

</llo_original>
